<compile_context>
chip_gen: v7x
topology: tpu7x:2x2x1
jax: 0.10.0
libtpu: 0.0.40
codegen_flags: <defaults>
</compile_context>

<pallas_src>
import functools

import jax
import jax.numpy as jnp
from jax.experimental import pallas as pl
from jax.experimental.pallas import tpu as pltpu

_BF16 = jnp.bfloat16


def _round_up(x, m):
    return (x + m - 1) // m * m


def _pad2(x, rows, cols):
    return jnp.pad(x, ((0, rows - x.shape[0]), (0, cols - x.shape[1])))


# ---------------------------------------------------------------------------
# Pallas kernels
# ---------------------------------------------------------------------------
def _hetero_sage_layer_kernel(a_ref, xsrc_ref, xdst_ref, wl_ref, wr_ref, b_ref,
                              out_ref, acc_ref):
    """One HeteroConv layer: both SAGEConv relations, tiled, fused bias+ReLU.

    grid = (relation, dst_tile, src_tile); src_tile (last axis) is the reduction.
      a_ref    : [tile_dst, tile_src]  bf16 row-normalized adjacency tile
      xsrc_ref : [tile_src, D_pad]     bf16
      xdst_ref : [tile_dst, D_pad]     bf16
      wl_ref   : [D_pad, H_pad]        bf16  neighbor (lin_l) weight
      wr_ref   : [D_pad, H_pad]        bf16  root     (lin_r) weight
      b_ref    : [1, H_pad]            f32   lin_l bias
      out_ref  : [tile_dst, H_pad]     bf16
      acc_ref  : [tile_dst, H_pad]     f32 scratch accumulator
    """
    k = pl.program_id(2)

    @pl.when(k == 0)
    def _():
        # Root term + bias, computed once per (relation, dst tile).
        acc_ref[...] = (
            jnp.dot(xdst_ref[...], wr_ref[...], preferred_element_type=jnp.float32)
            + b_ref[...])

    # Reordered chain: A @ (X_src @ W_l) — with H <= D_src this shrinks the big
    # N_dst x N_src matmul's output width and the VMEM intermediate.
    xw = jnp.dot(xsrc_ref[...], wl_ref[...],
                 preferred_element_type=jnp.float32).astype(_BF16)
    acc_ref[...] += jnp.dot(a_ref[...], xw, preferred_element_type=jnp.float32)

    @pl.when(k == pl.num_programs(2) - 1)
    def _():
        # TODO(synk): dropout p=0 in the reference module -> identity; p>0 not implemented.
        out_ref[...] = jnp.maximum(acc_ref[...], 0.0).astype(out_ref.dtype)


def _head_kernel(xu_ref, xs_ref, ea_ref, wu_ref, ws_ref, we_ref, b_ref, out_ref):
    """Fused concat + Linear(2H+5 -> 1) + sigmoid, transposed so the batch (M)
    dimension sits on the lane axis (lane-dense [1, tile_m] stores)."""
    z = (jnp.dot(wu_ref[...], xu_ref[...], preferred_element_type=jnp.float32)
         + jnp.dot(ws_ref[...], xs_ref[...], preferred_element_type=jnp.float32)
         + jnp.dot(we_ref[...], ea_ref[...], preferred_element_type=jnp.float32)
         + b_ref[...])
    out_ref[...] = jax.nn.sigmoid(z)


# ---------------------------------------------------------------------------
# Pallas wrappers
# ---------------------------------------------------------------------------
def hetero_sage_layer(a, x_src, x_dst, w_l, w_r, b, *, tile_dst, tile_src):
    n_rel, n_pad, _ = a.shape
    d_pad = x_src.shape[2]
    h_pad = w_l.shape[2]
    grid = (n_rel, n_pad // tile_dst, n_pad // tile_src)

    flops = n_rel * (2 * n_pad * n_pad * h_pad
                     + 2 * n_pad * d_pad * h_pad * (n_pad // tile_dst)
                     + 2 * n_pad * d_pad * h_pad)
    bytes_accessed = (sum(int(t.size) * t.dtype.itemsize
                          for t in (a, x_src, x_dst, w_l, w_r, b))
                      + n_rel * n_pad * h_pad * 2)

    return pl.pallas_call(
        _hetero_sage_layer_kernel,
        out_shape=jax.ShapeDtypeStruct((n_rel, n_pad, h_pad), _BF16),
        grid_spec=pltpu.PrefetchScalarGridSpec(
            num_scalar_prefetch=0,
            grid=grid,
            in_specs=[
                pl.BlockSpec((None, tile_dst, tile_src), lambda r, i, k: (r, i, k)),
                pl.BlockSpec((None, tile_src, d_pad), lambda r, i, k: (r, k, 0)),
                pl.BlockSpec((None, tile_dst, d_pad), lambda r, i, k: (r, i, 0)),
                pl.BlockSpec((None, d_pad, h_pad), lambda r, i, k: (r, 0, 0)),
                pl.BlockSpec((None, d_pad, h_pad), lambda r, i, k: (r, 0, 0)),
                pl.BlockSpec((None, 1, h_pad), lambda r, i, k: (r, 0, 0)),
            ],
            out_specs=pl.BlockSpec((None, tile_dst, h_pad), lambda r, i, k: (r, i, 0)),
            scratch_shapes=[pltpu.VMEM((tile_dst, h_pad), jnp.float32)],
        ),
        compiler_params=pltpu.CompilerParams(
            # relation & dst tiles are independent (megacore-shardable on v7x);
            # src tiles form the reduction -> arbitrary, last.
            dimension_semantics=("parallel", "parallel", "arbitrary"),
            vmem_limit_bytes=32 * 1024 * 1024,
        ),
        cost_estimate=pl.CostEstimate(flops=flops, transcendentals=0,
                                      bytes_accessed=bytes_accessed),
    )(a, x_src, x_dst, w_l, w_r, b)


def head(xu_t, xs_t, ea_t, wu_t, ws_t, we_t, b, *, tile_m=128):
    feat = xu_t.shape[0]
    m_pad = xu_t.shape[1]
    e_dim = ea_t.shape[0]
    return pl.pallas_call(
        _head_kernel,
        out_shape=jax.ShapeDtypeStruct((1, m_pad), jnp.float32),
        grid=(m_pad // tile_m,),
        in_specs=[
            pl.BlockSpec((feat, tile_m), lambda j: (0, j)),
            pl.BlockSpec((feat, tile_m), lambda j: (0, j)),
            pl.BlockSpec((e_dim, tile_m), lambda j: (0, j)),
            pl.BlockSpec((1, feat), lambda j: (0, 0)),
            pl.BlockSpec((1, feat), lambda j: (0, 0)),
            pl.BlockSpec((1, e_dim), lambda j: (0, 0)),
            pl.BlockSpec((1, 1), lambda j: (0, 0)),
        ],
        out_specs=pl.BlockSpec((1, tile_m), lambda j: (0, j)),
        compiler_params=pltpu.CompilerParams(dimension_semantics=("parallel",)),
    )(xu_t, xs_t, ea_t, wu_t, ws_t, we_t, b)


# ---------------------------------------------------------------------------
# Glue
# ---------------------------------------------------------------------------
def build_mean_adj(edge_index, n_src, n_dst, n_pad):
    """A[d, s] = (#edges s->d) / max(deg(d), 1)  ->  A @ X_src == scatter-mean.
    Duplicate edges keep PyG multiplicity semantics (counted, mean over count)."""
    src, dst = edge_index[0], edge_index[1]
    a = jnp.zeros((n_pad, n_pad), jnp.float32).at[dst, src].add(1.0)
    deg = jnp.sum(a, axis=1, keepdims=True)
    return a / jnp.maximum(deg, 1.0)


def hetero_gnn_forward(params, x_dict, x1, edge_index_dict, mask, ind, edge_attr,
                       *, tile_dst=128, tile_src=128):
    # TODO(synk): tile sizes should be re-derived per chip (v7x has only 64 MiB VMEM);
    # 128x128 bf16 tiles fit every generation's default scoped limit.
    # Embedding lookups (gather = glue).
    age = jnp.take(params["emb_age"], x1[:, 0], axis=0)        # [Nu, 32]
    gender = jnp.take(params["emb_gender"], x1[:, 1], axis=0)  # [Nu, 32]
    x_user = jnp.concatenate([age, gender, x_dict["user"]], axis=1)
    x_seller = x_dict["seller"]

    n_user, n_seller = x_user.shape[0], x_seller.shape[0]
    d_user, d_seller = x_user.shape[1], x_seller.shape[1]
    hidden = params["convs"][0]["seller"]["w_l"].shape[1]

    h_pad = _round_up(hidden, 128)                     # lane-dense conv output
    d_pad = _round_up(max(d_user, d_seller, h_pad), 128)
    n_pad = _round_up(_round_up(max(n_user, n_seller), tile_dst), tile_src)

    # TODO(synk): for large sparse graphs replace the dense padded adjacency with a
    # CSR segment-mean kernel (PrefetchScalarGridSpec scalar-prefetch of row offsets).
    a_buy = build_mean_adj(edge_index_dict[("user", "buy", "seller")],
                           n_user, n_seller, n_pad)    # dst=seller, src=user
    a_bb = build_mean_adj(edge_index_dict[("seller", "bought by", "user")],
                          n_seller, n_user, n_pad)     # dst=user,   src=seller
    a_stack = jnp.stack([a_buy, a_bb]).astype(_BF16)   # [2, n_pad, n_pad]

    xu_p = _pad2(x_user, n_pad, d_pad).astype(_BF16)
    xs_p = _pad2(x_seller, n_pad, d_pad).astype(_BF16)

    for layer in params["convs"]:
        x_src = jnp.stack([xu_p, xs_p])                # rel 0 (->seller) src=user
        x_dst = jnp.stack([xs_p, xu_p])                # rel 1 (->user)   src=seller
        w_l = jnp.stack([_pad2(layer["seller"]["w_l"], d_pad, h_pad),
                         _pad2(layer["user"]["w_l"], d_pad, h_pad)]).astype(_BF16)
        w_r = jnp.stack([_pad2(layer["seller"]["w_r"], d_pad, h_pad),
                         _pad2(layer["user"]["w_r"], d_pad, h_pad)]).astype(_BF16)
        b = jnp.stack([_pad2(layer["seller"]["b"], 1, h_pad),
                       _pad2(layer["user"]["b"], 1, h_pad)])           # f32
        out = hetero_sage_layer(a_stack, x_src, x_dst, w_l, w_r, b,
                                tile_dst=tile_dst, tile_src=tile_src)  # [2,n_pad,h_pad]
        xs_p = _pad2(out[0], n_pad, d_pad)
        xu_p = _pad2(out[1], n_pad, d_pad)

    # Mask / index gathers (glue); fused lane-dense linear+sigmoid head (kernel).
    m = mask.shape[0]
    m_pad = _round_up(m, 128)
    feat = xu_p.shape[1]
    xu_t = _pad2(xu_p[mask[:, 0].reshape(-1)], m_pad, feat).T          # [feat, m_pad]
    xs_t = _pad2(xs_p[mask[:, 1].reshape(-1)], m_pad, feat).T
    ea_t = _pad2(edge_attr[ind], m_pad, 8).T                           # [8,    m_pad]

    wu_t = _pad2(params["lin"]["w_u"], feat, 1).T.astype(_BF16)        # [1, feat]
    ws_t = _pad2(params["lin"]["w_s"], feat, 1).T.astype(_BF16)
    we_t = _pad2(params["lin"]["w_e"], 8, 1).T                         # [1, 8] f32
    b_lin = params["lin"]["b"]                                         # [1, 1] f32

    probs = head(xu_t, xs_t, ea_t, wu_t, ws_t, we_t, b_lin)            # [1, m_pad]
    return probs[0, :m]


# Pure-JAX f32 reference (for a tolerance check against the bf16 kernels).
def hetero_gnn_reference(params, x_dict, x1, edge_index_dict, mask, ind, edge_attr):
    age = jnp.take(params["emb_age"], x1[:, 0], axis=0)
    gender = jnp.take(params["emb_gender"], x1[:, 1], axis=0)
    x_user = jnp.concatenate([age, gender, x_dict["user"]], axis=1)
    x_seller = x_dict["seller"]
    n_user, n_seller = x_user.shape[0], x_seller.shape[0]

    def mean_adj(ei, n_src, n_dst):
        a = jnp.zeros((n_dst, n_src), jnp.float32).at[ei[1], ei[0]].add(1.0)
        return a / jnp.maximum(a.sum(1, keepdims=True), 1.0)

    a_buy = mean_adj(edge_index_dict[("user", "buy", "seller")], n_user, n_seller)
    a_bb = mean_adj(edge_index_dict[("seller", "bought by", "user")], n_seller, n_user)
    for layer in params["convs"]:
        ns = jnp.maximum((a_buy @ x_user) @ layer["seller"]["w_l"] + layer["seller"]["b"]
                         + x_seller @ layer["seller"]["w_r"], 0.0)
        nu = jnp.maximum((a_bb @ x_seller) @ layer["user"]["w_l"] + layer["user"]["b"]
                         + x_user @ layer["user"]["w_r"], 0.0)
        x_user, x_seller = nu, ns
    xu = x_user[mask[:, 0].reshape(-1)]
    xs = x_seller[mask[:, 1].reshape(-1)]
    ea = edge_attr[ind]
    z = (xu @ params["lin"]["w_u"] + xs @ params["lin"]["w_s"]
         + ea @ params["lin"]["w_e"] + params["lin"]["b"])
    return jax.nn.sigmoid(z).reshape(-1)


# ---------------------------------------------------------------------------
# Deterministic parameter construction
# ---------------------------------------------------------------------------
def make_params(key, d_user_in, d_seller_in, hidden):
    ks = iter(jax.random.split(key, 32))

    def dense(k, fan_in, fan_out):
        return (jax.random.normal(k, (fan_in, fan_out), jnp.float32)
                / jnp.sqrt(jnp.float32(fan_in)))

    params = {
        "emb_age": jax.random.normal(next(ks), (9, 32), jnp.float32),
        "emb_gender": jax.random.normal(next(ks), (3, 32), jnp.float32),
        "convs": [],
    }
    du, ds = d_user_in, d_seller_in
    for _ in range(2):
        layer = {
            # ('user','buy','seller'): src=user, dst=seller
            "seller": {"w_l": dense(next(ks), du, hidden),
                       "w_r": dense(next(ks), ds, hidden),
                       "b": jax.random.normal(next(ks), (1, hidden), jnp.float32) * 0.01},
            # ('seller','bought by','user'): src=seller, dst=user
            "user": {"w_l": dense(next(ks), ds, hidden),
                     "w_r": dense(next(ks), du, hidden),
                     "b": jax.random.normal(next(ks), (1, hidden), jnp.float32) * 0.01},
        }
        params["convs"].append(layer)
        du = ds = hidden

    params["lin"] = {
        "w_u": dense(next(ks), hidden, 1),
        "w_s": dense(next(ks), hidden, 1),
        "w_e": dense(next(ks), 5, 1),
        "b": jax.random.normal(next(ks), (1, 1), jnp.float32) * 0.01,
    }
    return params


if __name__ == "__main__":
    key = jax.random.PRNGKey(0)
    k = iter(jax.random.split(key, 16))

    N_USER, N_SELLER = 16, 24
    D_USER_BASE, D_SELLER = 8, 16
    HIDDEN = 32
    E_BUY, E_BB = 40, 40
    M = 8  # number of (user, seller) query pairs

    x_dict = {
        "user": jax.random.normal(next(k), (N_USER, D_USER_BASE), jnp.float32),
        "seller": jax.random.normal(next(k), (N_SELLER, D_SELLER), jnp.float32),
    }
    x1 = jnp.stack(
        [jax.random.randint(next(k), (N_USER,), 0, 9),
         jax.random.randint(next(k), (N_USER,), 0, 3)], axis=1).astype(jnp.int32)

    edge_index_dict = {
        ("user", "buy", "seller"): jnp.stack(
            [jax.random.randint(next(k), (E_BUY,), 0, N_USER),
             jax.random.randint(next(k), (E_BUY,), 0, N_SELLER)]).astype(jnp.int32),
        ("seller", "bought by", "user"): jnp.stack(
            [jax.random.randint(next(k), (E_BB,), 0, N_SELLER),
             jax.random.randint(next(k), (E_BB,), 0, N_USER)]).astype(jnp.int32),
    }

    edge_attr = jax.random.normal(next(k), (E_BUY, 5), jnp.float32)
    mask = jnp.stack(
        [jax.random.randint(next(k), (M,), 0, N_USER),
         jax.random.randint(next(k), (M,), 0, N_SELLER)], axis=1).astype(jnp.int32)
    ind = jax.random.randint(next(k), (M,), 0, E_BUY).astype(jnp.int32)

    params = make_params(jax.random.PRNGKey(42),
                         d_user_in=64 + D_USER_BASE,
                         d_seller_in=D_SELLER,
                         hidden=HIDDEN)

    fwd = jax.jit(functools.partial(hetero_gnn_forward))
    out = jax.block_until_ready(
        fwd(params, x_dict, x1, edge_index_dict, mask, ind, edge_attr))
    ref = hetero_gnn_reference(params, x_dict, x1, edge_index_dict, mask, ind, edge_attr)

    assert out.shape == (M,)
    assert bool(jnp.all((out >= 0.0) & (out <= 1.0)))
    assert bool(jnp.max(jnp.abs(out - ref)) < 5e-2), "mismatch vs f32 reference"
    print("KERNEL_OK")
</pallas_src>

<mosaic_0001>
module attributes {stable_mosaic.version = 11 : i64} {
  func.func @_hetero_sage_layer_kernel(%arg0: i32, %arg1: i32, %arg2: i32, %arg3: memref<1x128x128xbf16, #tpu.memory_space<vmem>>, %arg4: memref<1x128x128xbf16, #tpu.memory_space<vmem>>, %arg5: memref<1x128x128xbf16, #tpu.memory_space<vmem>>, %arg6: memref<1x128x128xbf16, #tpu.memory_space<vmem>>, %arg7: memref<1x128x128xbf16, #tpu.memory_space<vmem>>, %arg8: memref<1x1x128xf32, #tpu.memory_space<vmem>>, %arg9: memref<1x128x128xbf16, #tpu.memory_space<vmem>>, %arg10: memref<128x128xf32, #tpu.memory_space<vmem>>) attributes {dimension_semantics = [#tpu.dimension_semantics<parallel>, #tpu.dimension_semantics<parallel>, #tpu.dimension_semantics<arbitrary>], iteration_bounds = array<i64: 2, 1, 1>, scalar_prefetch = 0 : i64, scratch_operands = 1 : i64, tpu.core_type = #tpu.core_type<tc>, window_params = [{transform_indices = @transform_0, window_bounds = array<i64: 1, 128, 128>}, {transform_indices = @transform_1, window_bounds = array<i64: 1, 128, 128>}, {transform_indices = @transform_2, window_bounds = array<i64: 1, 128, 128>}, {transform_indices = @transform_3, window_bounds = array<i64: 1, 128, 128>}, {transform_indices = @transform_4, window_bounds = array<i64: 1, 128, 128>}, {transform_indices = @transform_5, window_bounds = array<i64: 1, 1, 128>}, {transform_indices = @transform_6, window_bounds = array<i64: 1, 128, 128>}]} {
    %c0_i32 = arith.constant 0 : i32
    %0 = arith.cmpi eq, %arg2, %c0_i32 : i32
    %1 = arith.extui %0 : i1 to i32
    %c0_i32_0 = arith.constant 0 : i32
    %2 = arith.cmpi ne, %1, %c0_i32_0 : i32
    scf.if %2 {
      %c0_16 = arith.constant 0 : index
      %c0_17 = arith.constant 0 : index
      %c0_18 = arith.constant 0 : index
      %18 = vector.load %arg5[%c0_16, %c0_17, %c0_18] : memref<1x128x128xbf16, #tpu.memory_space<vmem>>, vector<1x128x128xbf16>
      %19 = vector.shape_cast %18 : vector<1x128x128xbf16> to vector<128x128xbf16>
      %c0_19 = arith.constant 0 : index
      %c0_20 = arith.constant 0 : index
      %c0_21 = arith.constant 0 : index
      %20 = vector.load %arg7[%c0_19, %c0_20, %c0_21] : memref<1x128x128xbf16, #tpu.memory_space<vmem>>, vector<1x128x128xbf16>
      %21 = vector.shape_cast %20 : vector<1x128x128xbf16> to vector<128x128xbf16>
      %cst_22 = arith.constant dense<0.000000e+00> : vector<128x128xf32>
      %22 = tpu.matmul %19, %21, %cst_22 {dimension_numbers = #tpu.dot_dimension_numbers<[1], [0], [0], [1], [0, 0, 1, 1], [], []>} : vector<128x128xbf16>, vector<128x128xbf16>, vector<128x128xf32> -> vector<128x128xf32>
      %c0_23 = arith.constant 0 : index
      %c0_24 = arith.constant 0 : index
      %c0_25 = arith.constant 0 : index
      %23 = vector.load %arg8[%c0_23, %c0_24, %c0_25] : memref<1x1x128xf32, #tpu.memory_space<vmem>>, vector<1x1x128xf32>
      %24 = vector.shape_cast %23 : vector<1x1x128xf32> to vector<1x128xf32>
      %25 = vector.broadcast %24 : vector<1x128xf32> to vector<128x128xf32>
      %26 = arith.addf %22, %25 : vector<128x128xf32>
      %c0_26 = arith.constant 0 : index
      %c0_27 = arith.constant 0 : index
      %27 = vector.load %arg10[%c0_26, %c0_27] : memref<128x128xf32, #tpu.memory_space<vmem>>, vector<128x128xf32>
      tpu.vector_store %arg10[%c0_26, %c0_27], %26 {strides = array<i32>} : memref<128x128xf32, #tpu.memory_space<vmem>>, vector<128x128xf32>,
    } else {
    }
    %c0 = arith.constant 0 : index
    %c0_1 = arith.constant 0 : index
    %c0_2 = arith.constant 0 : index
    %3 = vector.load %arg4[%c0, %c0_1, %c0_2] : memref<1x128x128xbf16, #tpu.memory_space<vmem>>, vector<1x128x128xbf16>
    %4 = vector.shape_cast %3 : vector<1x128x128xbf16> to vector<128x128xbf16>
    %c0_3 = arith.constant 0 : index
    %c0_4 = arith.constant 0 : index
    %c0_5 = arith.constant 0 : index
    %5 = vector.load %arg6[%c0_3, %c0_4, %c0_5] : memref<1x128x128xbf16, #tpu.memory_space<vmem>>, vector<1x128x128xbf16>
    %6 = vector.shape_cast %5 : vector<1x128x128xbf16> to vector<128x128xbf16>
    %cst = arith.constant dense<0.000000e+00> : vector<128x128xf32>
    %7 = tpu.matmul %4, %6, %cst {dimension_numbers = #tpu.dot_dimension_numbers<[1], [0], [0], [1], [0, 0, 1, 1], [], []>} : vector<128x128xbf16>, vector<128x128xbf16>, vector<128x128xf32> -> vector<128x128xf32>
    %8 = arith.truncf %7 : vector<128x128xf32> to vector<128x128xbf16>
    %c0_6 = arith.constant 0 : index
    %c0_7 = arith.constant 0 : index
    %9 = vector.load %arg10[%c0_6, %c0_7] : memref<128x128xf32, #tpu.memory_space<vmem>>, vector<128x128xf32>
    %c0_8 = arith.constant 0 : index
    %c0_9 = arith.constant 0 : index
    %c0_10 = arith.constant 0 : index
    %10 = vector.load %arg3[%c0_8, %c0_9, %c0_10] : memref<1x128x128xbf16, #tpu.memory_space<vmem>>, vector<1x128x128xbf16>
    %11 = vector.shape_cast %10 : vector<1x128x128xbf16> to vector<128x128xbf16>
    %cst_11 = arith.constant dense<0.000000e+00> : vector<128x128xf32>
    %12 = tpu.matmul %11, %8, %cst_11 {dimension_numbers = #tpu.dot_dimension_numbers<[1], [0], [0], [1], [0, 0, 1, 1], [], []>} : vector<128x128xbf16>, vector<128x128xbf16>, vector<128x128xf32> -> vector<128x128xf32>
    %13 = arith.addf %9, %12 : vector<128x128xf32>
    %c0_12 = arith.constant 0 : index
    %c0_13 = arith.constant 0 : index
    %14 = vector.load %arg10[%c0_12, %c0_13] : memref<128x128xf32, #tpu.memory_space<vmem>>, vector<128x128xf32>
    tpu.vector_store %arg10[%c0_12, %c0_13], %13 {strides = array<i32>} : memref<128x128xf32, #tpu.memory_space<vmem>>, vector<128x128xf32>,
    %c0_i32_14 = arith.constant 0 : i32
    %15 = arith.cmpi eq, %arg2, %c0_i32_14 : i32
    %16 = arith.extui %15 : i1 to i32
    %c0_i32_15 = arith.constant 0 : i32
    %17 = arith.cmpi ne, %16, %c0_i32_15 : i32
    scf.if %17 {
      %c0_16 = arith.constant 0 : index
      %c0_17 = arith.constant 0 : index
      %18 = vector.load %arg10[%c0_16, %c0_17] : memref<128x128xf32, #tpu.memory_space<vmem>>, vector<128x128xf32>
      %cst_18 = arith.constant 0.000000e+00 : f32
      %19 = vector.broadcast %cst_18 : f32 to vector<128x128xf32>
      %20 = arith.maximumf %18, %19 : vector<128x128xf32>
      %21 = arith.truncf %20 : vector<128x128xf32> to vector<128x128xbf16>
      %c0_19 = arith.constant 0 : index
      %c0_20 = arith.constant 0 : index
      %c0_21 = arith.constant 0 : index
      %22 = vector.load %arg9[%c0_19, %c0_20, %c0_21] : memref<1x128x128xbf16, #tpu.memory_space<vmem>>, vector<1x128x128xbf16>
      %23 = vector.shape_cast %22 : vector<1x128x128xbf16> to vector<128x128xbf16>
      %24 = vector.shape_cast %21 : vector<128x128xbf16> to vector<1x128x128xbf16>
      tpu.vector_store %arg9[%c0_19, %c0_20, %c0_21], %24 {strides = array<i32>} : memref<1x128x128xbf16, #tpu.memory_space<vmem>>, vector<1x128x128xbf16>,
    } else {
    }
    return
  }
  func.func @transform_0(%arg0: i32, %arg1: i32, %arg2: i32) -> (i32, i32, i32) {
    %c0_i32 = arith.constant 0 : i32
    return %arg0, %arg1, %arg2 : i32, i32, i32
  }
  func.func @transform_1(%arg0: i32, %arg1: i32, %arg2: i32) -> (i32, i32, i32) {
    %c0_i32 = arith.constant 0 : i32
    %c0_i32_0 = arith.constant 0 : i32
    return %arg0, %arg2, %c0_i32 : i32, i32, i32
  }
  func.func @transform_2(%arg0: i32, %arg1: i32, %arg2: i32) -> (i32, i32, i32) {
    %c0_i32 = arith.constant 0 : i32
    %c0_i32_0 = arith.constant 0 : i32
    return %arg0, %arg1, %c0_i32 : i32, i32, i32
  }
  func.func @transform_3(%arg0: i32, %arg1: i32, %arg2: i32) -> (i32, i32, i32) {
    %c0_i32 = arith.constant 0 : i32
    %c0_i32_0 = arith.constant 0 : i32
    %c0_i32_1 = arith.constant 0 : i32
    return %arg0, %c0_i32, %c0_i32_0 : i32, i32, i32
  }
  func.func @transform_4(%arg0: i32, %arg1: i32, %arg2: i32) -> (i32, i32, i32) {
    %c0_i32 = arith.constant 0 : i32
    %c0_i32_0 = arith.constant 0 : i32
    %c0_i32_1 = arith.constant 0 : i32
    return %arg0, %c0_i32, %c0_i32_0 : i32, i32, i32
  }
  func.func @transform_5(%arg0: i32, %arg1: i32, %arg2: i32) -> (i32, i32, i32) {
    %c0_i32 = arith.constant 0 : i32
    %c0_i32_0 = arith.constant 0 : i32
    %c0_i32_1 = arith.constant 0 : i32
    return %arg0, %c0_i32, %c0_i32_0 : i32, i32, i32
  }
  func.func @transform_6(%arg0: i32, %arg1: i32, %arg2: i32) -> (i32, i32, i32) {
    %c0_i32 = arith.constant 0 : i32
    %c0_i32_0 = arith.constant 0 : i32
    return %arg0, %arg1, %c0_i32 : i32, i32, i32
  }
}

module attributes {stable_mosaic.version = 11 : i64} {
  func.func @_head_kernel(%arg0: i32, %arg1: memref<128x128xbf16, #tpu.memory_space<vmem>>, %arg2: memref<128x128xbf16, #tpu.memory_space<vmem>>, %arg3: memref<8x128xf32, #tpu.memory_space<vmem>>, %arg4: memref<1x128xbf16, #tpu.memory_space<vmem>>, %arg5: memref<1x128xbf16, #tpu.memory_space<vmem>>, %arg6: memref<1x8xf32, #tpu.memory_space<vmem>>, %arg7: memref<1x1xf32, #tpu.memory_space<vmem>>, %arg8: memref<1x128xf32, #tpu.memory_space<vmem>>) attributes {dimension_semantics = [#tpu.dimension_semantics<parallel>], iteration_bounds = array<i64: 1>, scalar_prefetch = 0 : i64, scratch_operands = 0 : i64, tpu.core_type = #tpu.core_type<tc>, window_params = [{transform_indices = @transform_0, window_bounds = array<i64: 128, 128>}, {transform_indices = @transform_1, window_bounds = array<i64: 128, 128>}, {transform_indices = @transform_2, window_bounds = array<i64: 8, 128>}, {pipeline_mode = #tpu.pipeline_mode<synchronous>, transform_indices = @transform_3, window_bounds = array<i64: 1, 128>}, {pipeline_mode = #tpu.pipeline_mode<synchronous>, transform_indices = @transform_4, window_bounds = array<i64: 1, 128>}, {pipeline_mode = #tpu.pipeline_mode<synchronous>, transform_indices = @transform_5, window_bounds = array<i64: 1, 8>}, {pipeline_mode = #tpu.pipeline_mode<synchronous>, transform_indices = @transform_6, window_bounds = array<i64: 1, 1>}, {transform_indices = @transform_7, window_bounds = array<i64: 1, 128>}]} {
    %c0 = arith.constant 0 : index
    %c0_0 = arith.constant 0 : index
    %0 = vector.load %arg4[%c0, %c0_0] : memref<1x128xbf16, #tpu.memory_space<vmem>>, vector<1x128xbf16>
    %c0_1 = arith.constant 0 : index
    %c0_2 = arith.constant 0 : index
    %1 = vector.load %arg1[%c0_1, %c0_2] : memref<128x128xbf16, #tpu.memory_space<vmem>>, vector<128x128xbf16>
    %cst = arith.constant dense<0.000000e+00> : vector<1x128xf32>
    %2 = tpu.matmul %0, %1, %cst {dimension_numbers = #tpu.dot_dimension_numbers<[1], [0], [0], [1], [0, 0, 1, 1], [], []>} : vector<1x128xbf16>, vector<128x128xbf16>, vector<1x128xf32> -> vector<1x128xf32>
    %c0_3 = arith.constant 0 : index
    %c0_4 = arith.constant 0 : index
    %3 = vector.load %arg5[%c0_3, %c0_4] : memref<1x128xbf16, #tpu.memory_space<vmem>>, vector<1x128xbf16>
    %c0_5 = arith.constant 0 : index
    %c0_6 = arith.constant 0 : index
    %4 = vector.load %arg2[%c0_5, %c0_6] : memref<128x128xbf16, #tpu.memory_space<vmem>>, vector<128x128xbf16>
    %cst_7 = arith.constant dense<0.000000e+00> : vector<1x128xf32>
    %5 = tpu.matmul %3, %4, %cst_7 {dimension_numbers = #tpu.dot_dimension_numbers<[1], [0], [0], [1], [0, 0, 1, 1], [], []>} : vector<1x128xbf16>, vector<128x128xbf16>, vector<1x128xf32> -> vector<1x128xf32>
    %6 = arith.addf %2, %5 : vector<1x128xf32>
    %c0_8 = arith.constant 0 : index
    %c0_9 = arith.constant 0 : index
    %7 = vector.load %arg6[%c0_8, %c0_9] : memref<1x8xf32, #tpu.memory_space<vmem>>, vector<1x8xf32>
    %c0_10 = arith.constant 0 : index
    %c0_11 = arith.constant 0 : index
    %8 = vector.load %arg3[%c0_10, %c0_11] : memref<8x128xf32, #tpu.memory_space<vmem>>, vector<8x128xf32>
    %cst_12 = arith.constant dense<0.000000e+00> : vector<1x128xf32>
    %9 = tpu.matmul %7, %8, %cst_12 {dimension_numbers = #tpu.dot_dimension_numbers<[1], [0], [0], [1], [0, 0, 1, 1], [], []>} : vector<1x8xf32>, vector<8x128xf32>, vector<1x128xf32> -> vector<1x128xf32>
    %10 = arith.addf %6, %9 : vector<1x128xf32>
    %c0_13 = arith.constant 0 : index
    %c0_14 = arith.constant 0 : index
    %11 = vector.load %arg7[%c0_13, %c0_14] : memref<1x1xf32, #tpu.memory_space<vmem>>, vector<1x1xf32>
    %12 = vector.broadcast %11 : vector<1x1xf32> to vector<1x128xf32>
    %13 = arith.addf %10, %12 : vector<1x128xf32>
    %14 = arith.negf %13 : vector<1x128xf32>
    %15 = math.exp %14 : vector<1x128xf32>
    %cst_15 = arith.constant 1.000000e+00 : f32
    %16 = vector.broadcast %cst_15 : f32 to vector<1x128xf32>
    %17 = arith.addf %16, %15 : vector<1x128xf32>
    %18 = arith.divf %16, %17 : vector<1x128xf32>
    %c0_16 = arith.constant 0 : index
    %c0_17 = arith.constant 0 : index
    %19 = vector.load %arg8[%c0_16, %c0_17] : memref<1x128xf32, #tpu.memory_space<vmem>>, vector<1x128xf32>
    tpu.vector_store %arg8[%c0_16, %c0_17], %18 {strides = array<i32>} : memref<1x128xf32, #tpu.memory_space<vmem>>, vector<1x128xf32>,
    return
  }
  func.func @transform_0(%arg0: i32) -> (i32, i32) {
    %c0_i32 = arith.constant 0 : i32
    %c0_i32_0 = arith.constant 0 : i32
    return %c0_i32, %arg0 : i32, i32
  }
  func.func @transform_1(%arg0: i32) -> (i32, i32) {
    %c0_i32 = arith.constant 0 : i32
    %c0_i32_0 = arith.constant 0 : i32
    return %c0_i32, %arg0 : i32, i32
  }
  func.func @transform_2(%arg0: i32) -> (i32, i32) {
    %c0_i32 = arith.constant 0 : i32
    %c0_i32_0 = arith.constant 0 : i32
    return %c0_i32, %arg0 : i32, i32
  }
  func.func @transform_3(%arg0: i32) -> (i32, i32) {
    %c0_i32 = arith.constant 0 : i32
    %c0_i32_0 = arith.constant 0 : i32
    %c0_i32_1 = arith.constant 0 : i32
    return %c0_i32, %c0_i32_0 : i32, i32
  }
  func.func @transform_4(%arg0: i32) -> (i32, i32) {
    %c0_i32 = arith.constant 0 : i32
    %c0_i32_0 = arith.constant 0 : i32
    %c0_i32_1 = arith.constant 0 : i32
    return %c0_i32, %c0_i32_0 : i32, i32
  }
  func.func @transform_5(%arg0: i32) -> (i32, i32) {
    %c0_i32 = arith.constant 0 : i32
    %c0_i32_0 = arith.constant 0 : i32
    %c0_i32_1 = arith.constant 0 : i32
    return %c0_i32, %c0_i32_0 : i32, i32
  }
  func.func @transform_6(%arg0: i32) -> (i32, i32) {
    %c0_i32 = arith.constant 0 : i32
    %c0_i32_0 = arith.constant 0 : i32
    %c0_i32_1 = arith.constant 0 : i32
    return %c0_i32, %c0_i32_0 : i32, i32
  }
  func.func @transform_7(%arg0: i32) -> (i32, i32) {
    %c0_i32 = arith.constant 0 : i32
    %c0_i32_0 = arith.constant 0 : i32
    return %c0_i32, %arg0 : i32, i32
  }
}

</mosaic_0001>

<llo_original>
// kernel: hetero_gnn_forward.5
$region0: #{hetero_gnn_forward.5}
  #allocation0 [shape = 'u32[]', space=smem, size = 0x4, offset = 0x4, fixed_abs, tag = 'smem constant byte address 0x4 - core index']
  #allocation1 [shape = 'u32[144,128]{1,0:T(1,128)}', space=vmem, size = 0x12000, scoped, tag = 'internal scratch']
  #allocation2 [shape = 'f32[1,1]{1,0:T(1,128)S(1)}', space=vmem, size = 0x200, scoped, tag = 'scoped memory for hetero_gnn_forward.5']
  %s0 = inlined_call_operand.vmem [shape: bf16[128,128], index: 0, kind: input, shape index: {}]
  %s1 = inlined_call_operand.vmem [shape: bf16[128,128], index: 1, kind: input, shape index: {}]
  %s2 = inlined_call_operand.vmem [shape: f32[8,128], index: 2, kind: input, shape index: {}]
  %s3 = inlined_call_operand.vmem [shape: bf16[1,128], index: 3, kind: input, shape index: {}]
  %s4 = inlined_call_operand.vmem [shape: bf16[1,128], index: 4, kind: input, shape index: {}]
  %s5 = inlined_call_operand.vmem [shape: f32[1,8], index: 5, kind: input, shape index: {}]
  %s6 = inlined_call_operand.<no memory space> [shape: f32[1,1], index: 6, kind: input, shape index: {}]
  %s7 = inlined_call_operand.vmem [shape: f32[1,128], index: 7, kind: output, shape index: {}]
  %s8 = sld [smem:[#allocation0]]
  $region38: #{hetero_gnn_forward.5} parent=0
    _
  %s10 = ssub.s32 1, %s8
  %s11 = scalar_select 0, %s10, %s8
  %v12 = vstv %s6
  %13 = vst [vmem:[#allocation2] sm:$0x1] %v12
  // Predicated region
  $region2: #{hetero_gnn_forward.5} parent=0 // pred_check
    _
  $region3: #{hetero_gnn_forward.5} parent=0 // pred_check_branch
    %15 = sbr.rel (0) target = $region5
  $region4: #{hetero_gnn_forward.5} parent=0 // pred_region
    _
  $region5: #{hetero_gnn_forward.5} parent=0 // pred_fallthru
    _
  // Predicated region
  $region6: #{hetero_gnn_forward.5} parent=0 // pred_check
    _
  $region7: #{hetero_gnn_forward.5} parent=0 // pred_check_branch
    %17 = sbr.rel (0) target = $region9
  $region8: #{hetero_gnn_forward.5} parent=0 // pred_region
    _
  $region9: #{hetero_gnn_forward.5} parent=0 // pred_fallthru
    _
  // Predicated region
  $region10: #{hetero_gnn_forward.5} parent=0 // pred_check
    _
  $region11: #{hetero_gnn_forward.5} parent=0 // pred_check_branch
    %19 = sbr.rel (0) target = $region13
  $region12: #{hetero_gnn_forward.5} parent=0 // pred_region
    _
  $region13: #{hetero_gnn_forward.5} parent=0 // pred_fallthru
    _
  // Predicated region
  $region14: #{hetero_gnn_forward.5} parent=0 // pred_check
    _
  $region15: #{hetero_gnn_forward.5} parent=0 // pred_check_branch
    %21 = sbr.rel (0) target = $region17
  $region16: #{hetero_gnn_forward.5} parent=0 // pred_region
    _
  $region17: #{hetero_gnn_forward.5} parent=0 // pred_fallthru
    _
  // Predicated region
  $region18: #{hetero_gnn_forward.5} parent=0 // pred_check
    _
  $region19: #{hetero_gnn_forward.5} parent=0 // pred_check_branch
    %23 = sbr.rel (0) target = $region21
  $region20: #{hetero_gnn_forward.5} parent=0 // pred_region
    _
  $region21: #{hetero_gnn_forward.5} parent=0 // pred_fallthru
    _
  // Predicated region
  $region22: #{hetero_gnn_forward.5} parent=0 // pred_check
    _
  $region23: #{hetero_gnn_forward.5} parent=0 // pred_check_branch
    %25 = sbr.rel (0) target = $region25
  $region24: #{hetero_gnn_forward.5} parent=0 // pred_region
    _
  $region25: #{hetero_gnn_forward.5} parent=0 // pred_fallthru
    _
  // Predicated region
  $region26: #{hetero_gnn_forward.5} parent=0 // pred_check
    _
  $region27: #{hetero_gnn_forward.5} parent=0 // pred_check_branch
    %27 = sbr.rel (0) target = $region29
  $region28: #{hetero_gnn_forward.5} parent=0 // pred_region
    _
  $region29: #{hetero_gnn_forward.5} parent=0 // pred_fallthru
    _
  %v29 = vld [vmem:[%s3] sm:$0x1]
  %v30 = vld [vmem:[%s0] sm:$0xf]
  %v31 = vld [vmem:[%s0 + $0x4] sm:$0xf]
  %v32 = vld [vmem:[%s0 + $0x8] sm:$0xf]
  %v33 = vld [vmem:[%s0 + $0xc] sm:$0xf]
  %v34 = vld [vmem:[%s0 + $0x10] sm:$0xf]
  %v35 = vld [vmem:[%s0 + $0x14] sm:$0xf]
  %v36 = vld [vmem:[%s0 + $0x18] sm:$0xf]
  %v37 = vld [vmem:[%s0 + $0x1c] sm:$0xf]
  %v38 = vld [vmem:[%s0 + $0x20] sm:$0xf]
  %v39 = vld [vmem:[%s0 + $0x24] sm:$0xf]
  %v40 = vld [vmem:[%s0 + $0x28] sm:$0xf]
  %v41 = vld [vmem:[%s0 + $0x2c] sm:$0xf]
  %v42 = vld [vmem:[%s0 + $0x30] sm:$0xf]
  %v43 = vld [vmem:[%s0 + $0x34] sm:$0xf]
  %v44 = vld [vmem:[%s0 + $0x38] sm:$0xf]
  %v45 = vld [vmem:[%s0 + $0x3c] sm:$0xf]
  %v46 = vld [vmem:[%s4] sm:$0x1]
  %v47 = vld [vmem:[%s1] sm:$0xf]
  %v48 = vld [vmem:[%s1 + $0x4] sm:$0xf]
  %v49 = vld [vmem:[%s1 + $0x8] sm:$0xf]
  %v50 = vld [vmem:[%s1 + $0xc] sm:$0xf]
  %v51 = vld [vmem:[%s1 + $0x10] sm:$0xf]
  %v52 = vld [vmem:[%s1 + $0x14] sm:$0xf]
  %v53 = vld [vmem:[%s1 + $0x18] sm:$0xf]
  %v54 = vld [vmem:[%s1 + $0x1c] sm:$0xf]
  %v55 = vld [vmem:[%s1 + $0x20] sm:$0xf]
  %v56 = vld [vmem:[%s1 + $0x24] sm:$0xf]
  %v57 = vld [vmem:[%s1 + $0x28] sm:$0xf]
  %v58 = vld [vmem:[%s1 + $0x2c] sm:$0xf]
  %v59 = vld [vmem:[%s1 + $0x30] sm:$0xf]
  %v60 = vld [vmem:[%s1 + $0x34] sm:$0xf]
  %v61 = vld [vmem:[%s1 + $0x38] sm:$0xf]
  %v62 = vld [vmem:[%s1 + $0x3c] sm:$0xf]
  %v79 = vunpack.c.l.b16 %v47
  %v80 = vunpack.c.l.b16 %v48
  %v81 = vunpack.c.l.b16 %v49
  %v82 = vunpack.c.l.b16 %v50
  %v83 = vunpack.c.l.b16 %v51
  %v84 = vunpack.c.l.b16 %v52
  %v85 = vunpack.c.l.b16 %v53
  %v86 = vunpack.c.l.b16 %v54
  %v87 = vunpack.c.l.b16 %v55
  %v88 = vunpack.c.l.b16 %v56
  %v89 = vunpack.c.l.b16 %v57
  %v90 = vunpack.c.l.b16 %v58
  %v91 = vunpack.c.l.b16 %v59
  %v92 = vunpack.c.l.b16 %v60
  %v93 = vunpack.c.l.b16 %v61
  %v94 = vunpack.c.l.b16 %v62
  %v95 = vpack.c.b16 %v80, %v79
  %v96 = vpack.c.b16 %v82, %v81
  %v97 = vpack.c.b16 %v84, %v83
  %v98 = vpack.c.b16 %v86, %v85
  %v99 = vpack.c.b16 %v88, %v87
  %v100 = vpack.c.b16 %v90, %v89
  %v101 = vpack.c.b16 %v92, %v91
  %v102 = vpack.c.b16 %v94, %v93
  %111 = vmatprep.subr.bf16.mxu0 0
  %112 = vmatpush1.bf16.msra.mxu0 %v95
  %113 = vmatprep.subr.bf16.mxu0 0
  %114 = vmatpush1.bf16.msra.mxu0 %v96
  %115 = vmatprep.subr.bf16.mxu0 0
  %116 = vmatpush1.bf16.msra.mxu0 %v97
  %117 = vmatprep.subr.bf16.mxu0 0
  %118 = vmatpush1.bf16.msra.mxu0 %v98
  %119 = vmatprep.subr.bf16.mxu0 0
  %120 = vmatpush1.bf16.msra.mxu0 %v99
  %121 = vmatprep.subr.bf16.mxu0 0
  %122 = vmatpush1.bf16.msra.mxu0 %v100
  %123 = vmatprep.subr.bf16.mxu0 0
  %124 = vmatpush1.bf16.msra.mxu0 %v101
  %125 = vmatprep.subr.bf16.mxu0 0
  %126 = vmatpush1.bf16.msra.mxu0 %v102
  %127 = vmatprep.subr.bf16.mxu0 0
  %128 = vmatpush1.bf16.msra.mxu0 0
  %129 = vmatprep.subr.bf16.mxu0 0
  %130 = vmatpush1.bf16.msra.mxu0 0
  %131 = vmatprep.subr.bf16.mxu0 0
  %132 = vmatpush1.bf16.msra.mxu0 0
  %133 = vmatprep.subr.bf16.mxu0 0
  %134 = vmatpush1.bf16.msra.mxu0 0
  %135 = vmatprep.subr.bf16.mxu0 0
  %136 = vmatpush1.bf16.msra.mxu0 0
  %137 = vmatprep.subr.bf16.mxu0 0
  %138 = vmatpush1.bf16.msra.mxu0 0
  %139 = vmatprep.subr.bf16.mxu0 0
  %140 = vmatpush1.bf16.msra.mxu0 0
  %141 = vmatprep.subr.bf16.mxu0 0
  %142 = vmatpush1.bf16.msra.mxu0 0
  %143 = vmatprep.mubr.bf16.mxu0 0
  %144 = vmatmul.mubr.bf16.gmra.mrb[0].mxu0 %v46
  %v145 = vpop.f32.mrb[0].mxu0
  %v146 = vadd.f32 0.0, %v145
  %v147 = vpop.f32.mrb[0].mxu0
  %v148 = vpop.f32.mrb[0].mxu0
  %v149 = vpop.f32.mrb[0].mxu0
  %150 = vdwg.mxu0
  %v167 = vunpack.c.l.b16 %v30
  %v168 = vunpack.c.l.b16 %v31
  %v169 = vunpack.c.l.b16 %v32
  %v170 = vunpack.c.l.b16 %v33
  %v171 = vunpack.c.l.b16 %v34
  %v172 = vunpack.c.l.b16 %v35
  %v173 = vunpack.c.l.b16 %v36
  %v174 = vunpack.c.l.b16 %v37
  %v175 = vunpack.c.l.b16 %v38
  %v176 = vunpack.c.l.b16 %v39
  %v177 = vunpack.c.l.b16 %v40
  %v178 = vunpack.c.l.b16 %v41
  %v179 = vunpack.c.l.b16 %v42
  %v180 = vunpack.c.l.b16 %v43
  %v181 = vunpack.c.l.b16 %v44
  %v182 = vunpack.c.l.b16 %v45
  %v183 = vpack.c.b16 %v168, %v167
  %v184 = vpack.c.b16 %v170, %v169
  %v185 = vpack.c.b16 %v172, %v171
  %v186 = vpack.c.b16 %v174, %v173
  %v187 = vpack.c.b16 %v176, %v175
  %v188 = vpack.c.b16 %v178, %v177
  %v189 = vpack.c.b16 %v180, %v179
  %v190 = vpack.c.b16 %v182, %v181
  %199 = vmatprep.subr.bf16.mxu0 0
  %200 = vmatpush1.bf16.msra.mxu0 %v183
  %201 = vmatprep.subr.bf16.mxu0 0
  %202 = vmatpush1.bf16.msra.mxu0 %v184
  %203 = vmatprep.subr.bf16.mxu0 0
  %204 = vmatpush1.bf16.msra.mxu0 %v185
  %205 = vmatprep.subr.bf16.mxu0 0
  %206 = vmatpush1.bf16.msra.mxu0 %v186
  %207 = vmatprep.subr.bf16.mxu0 0
  %208 = vmatpush1.bf16.msra.mxu0 %v187
  %209 = vmatprep.subr.bf16.mxu0 0
  %210 = vmatpush1.bf16.msra.mxu0 %v188
  %211 = vmatprep.subr.bf16.mxu0 0
  %212 = vmatpush1.bf16.msra.mxu0 %v189
  %213 = vmatprep.subr.bf16.mxu0 0
  %214 = vmatpush1.bf16.msra.mxu0 %v190
  %215 = vmatprep.subr.bf16.mxu0 0
  %216 = vmatpush1.bf16.msra.mxu0 0
  %217 = vmatprep.subr.bf16.mxu0 0
  %218 = vmatpush1.bf16.msra.mxu0 0
  %219 = vmatprep.subr.bf16.mxu0 0
  %220 = vmatpush1.bf16.msra.mxu0 0
  %221 = vmatprep.subr.bf16.mxu0 0
  %222 = vmatpush1.bf16.msra.mxu0 0
  %223 = vmatprep.subr.bf16.mxu0 0
  %224 = vmatpush1.bf16.msra.mxu0 0
  %225 = vmatprep.subr.bf16.mxu0 0
  %226 = vmatpush1.bf16.msra.mxu0 0
  %227 = vmatprep.subr.bf16.mxu0 0
  %228 = vmatpush1.bf16.msra.mxu0 0
  %229 = vmatprep.subr.bf16.mxu0 0
  %230 = vmatpush1.bf16.msra.mxu0 0
  %231 = vmatprep.mubr.bf16.mxu0 0
  %232 = vmatmul.mubr.bf16.gmra.mrb[0].mxu0 %v29
  %v233 = vpop.f32.mrb[0].mxu0
  %v234 = vadd.f32 %v146, %v233
  %v235 = vpop.f32.mrb[0].mxu0
  %v236 = vpop.f32.mrb[0].mxu0
  %v237 = vpop.f32.mrb[0].mxu0
  %238 = vdwg.mxu0
  %v239 = vld [vmem:[%s5] sm:$0x1]
  %v240 = vld [vmem:[%s2] sm:$0xff]
  %vm241 = vcmask 64512
  %v243 = vsel %vm241, %v239, 0
  %245 = vmatprep.subr.mxu0 0.0
  %246 = vmatpush1.msra.mxu0 %v240
  %247 = vmatprep.subr.mxu0 0.0
  %248 = vmatpush1.msra.mxu0 0.0
  %249 = vmatprep.subr.mxu0 0.0
  %250 = vmatpush1.msra.mxu0 0.0
  %251 = vmatprep.subr.mxu0 0.0
  %252 = vmatpush1.msra.mxu0 0.0
  %253 = vmatprep.subr.mxu0 0.0
  %254 = vmatpush1.msra.mxu0 0.0
  %255 = vmatprep.subr.mxu0 0.0
  %256 = vmatpush1.msra.mxu0 0.0
  %257 = vmatprep.subr.mxu0 0.0
  %258 = vmatpush1.msra.mxu0 0.0
  %259 = vmatprep.subr.mxu0 0.0
  %260 = vmatpush1.msra.mxu0 0.0
  %261 = vmatprep.subr.mxu0 0.0
  %262 = vmatpush1.msra.mxu0 0.0
  %263 = vmatprep.subr.mxu0 0.0
  %264 = vmatpush1.msra.mxu0 0.0
  %265 = vmatprep.subr.mxu0 0.0
  %266 = vmatpush1.msra.mxu0 0.0
  %267 = vmatprep.subr.mxu0 0.0
  %268 = vmatpush1.msra.mxu0 0.0
  %269 = vmatprep.subr.mxu0 0.0
  %270 = vmatpush1.msra.mxu0 0.0
  %271 = vmatprep.subr.mxu0 0.0
  %272 = vmatpush1.msra.mxu0 0.0
  %273 = vmatprep.subr.mxu0 0.0
  %274 = vmatpush1.msra.mxu0 0.0
  %275 = vmatprep.subr.mxu0 0.0
  %276 = vmatpush1.msra.mxu0 0.0
  %277 = vmatprep.subr.mxu0 0.0
  %278 = vmatpush1.msra.mxu0 0.0
  %279 = vmatprep.subr.mxu0 0.0
  %280 = vmatpush1.msra.mxu0 0.0
  %281 = vmatprep.subr.mxu0 0.0
  %282 = vmatpush1.msra.mxu0 0.0
  %283 = vmatprep.subr.mxu0 0.0
  %284 = vmatpush1.msra.mxu0 0.0
  %285 = vmatprep.subr.mxu0 0.0
  %286 = vmatpush1.msra.mxu0 0.0
  %287 = vmatprep.subr.mxu0 0.0
  %288 = vmatpush1.msra.mxu0 0.0
  %289 = vmatprep.subr.mxu0 0.0
  %290 = vmatpush1.msra.mxu0 0.0
  %291 = vmatprep.subr.mxu0 0.0
  %292 = vmatpush1.msra.mxu0 0.0
  %293 = vmatprep.subr.mxu0 0.0
  %294 = vmatpush1.msra.mxu0 0.0
  %295 = vmatprep.subr.mxu0 0.0
  %296 = vmatpush1.msra.mxu0 0.0
  %297 = vmatprep.subr.mxu0 0.0
  %298 = vmatpush1.msra.mxu0 0.0
  %299 = vmatprep.subr.mxu0 0.0
  %300 = vmatpush1.msra.mxu0 0.0
  %301 = vmatprep.subr.mxu0 0.0
  %302 = vmatpush1.msra.mxu0 0.0
  %303 = vmatprep.subr.mxu0 0.0
  %304 = vmatpush1.msra.mxu0 0.0
  %305 = vmatprep.subr.mxu0 0.0
  %306 = vmatpush1.msra.mxu0 0.0
  %307 = vmatprep.subr.mxu0 0.0
  %308 = vmatpush1.msra.mxu0 0.0
  %309 = vmatprep.mubr.f32.mxu0 0.0
  %310 = vmatmul.mubr.f32.gmra.mrb[0].mxu0 %v243
  %v311 = vpop.f32.mrb[0].mxu0
  %v312 = vadd.f32 0.0, %v311
  %v313 = vpop.f32.mrb[0].mxu0
  %314 = vdwg.mxu0
  %v315 = vadd.f32 %v234, %v312
  %v316 = vld [vmem:[#allocation2] sm:$0x1]
  %318 = vset.pattern.permute.xlu0 0
  %319 = vperm.xlu0 %318, %v316
  %v320 = vpop.permute.xlu0 %319
  %v322 = vlaneseq
  %v323 = vshrl.u32 %v322, 7
  %v324 = vsub.s32 0, %v323
  %v325 = vrot.slane %v320, %v324
  %v326 = vadd.f32 %v315, %v325
  %v327 = vxor.u32 %v326, 2147483648
  %v328 = vmul.f32 %v327, 1.442695
  %v329 = vpow.pop %v328
  %v330 = vadd.f32 %v329, 1.0
  %v331 = vrcp.pop %v330
  %v332 = vmul.f32 1.0, %v331
  %333 = vst [vmem:[%s7] sm:$0x1] %v332
  // Predicated region
  $region30: #{hetero_gnn_forward.5} parent=0 // pred_check
    _
  $region31: #{hetero_gnn_forward.5} parent=0 // pred_check_branch
    %335 = sbr.rel (0) target = $region33
  $region32: #{hetero_gnn_forward.5} parent=0 // pred_region
    _
  $region33: #{hetero_gnn_forward.5} parent=0 // pred_fallthru
    _
  // Predicated region
  $region34: #{hetero_gnn_forward.5} parent=0 // pred_check
    _
  $region35: #{hetero_gnn_forward.5} parent=0 // pred_check_branch
    %337 = sbr.rel (0) target = $region37
  $region36: #{hetero_gnn_forward.5} parent=0 // pred_region
    _
  $region37: #{hetero_gnn_forward.5} parent=0 // pred_fallthru
    _

// kernel: hetero_gnn_forward.3
$region0: #{hetero_gnn_forward.3}
  #allocation0 [shape = 'u32[]', space=smem, size = 0x4, offset = 0x4, fixed_abs, tag = 'smem constant byte address 0x4 - core index']
  #allocation1 [shape = 'u32[144,128]{1,0:T(1,128)}', space=vmem, size = 0x12000, scoped, tag = 'internal scratch']
  #allocation2 [shape = 'f32[128,128]{1,0:T(8,128)}', space=vmem, size = 0x10000, scoped, tag = 'scratch operand']
  %s0 = inlined_call_operand.vmem [shape: bf16[2,128,128], index: 0, kind: input, shape index: {}]
  %s1 = inlined_call_operand.vmem [shape: bf16[2,128,128], index: 1, kind: input, shape index: {}]
  %s2 = inlined_call_operand.vmem [shape: bf16[2,128,128], index: 2, kind: input, shape index: {}]
  %s3 = inlined_call_operand.vmem [shape: bf16[2,128,128], index: 3, kind: input, shape index: {}]
  %s4 = inlined_call_operand.vmem [shape: bf16[2,128,128], index: 4, kind: input, shape index: {}]
  %s5 = inlined_call_operand.vmem [shape: f32[2,1,128], index: 5, kind: input, shape index: {}]
  %s6 = inlined_call_operand.vmem [shape: bf16[2,128,128], index: 6, kind: output, shape index: {}]
  %s7 = sld [smem:[#allocation0]]
  $region65: #{hetero_gnn_forward.3} parent=0
    _
  %s9 = ssub.s32 1, %s7
  %s10 = scalar_select 0, %s9, %s7
  loop: start=0, step=1, limit=4
  $region2: #{hetero_gnn_forward.3} parent=0 // loop_pre_header
    _
  $region3: #{hetero_gnn_forward.3} parent=0 // loop_header
    %s12 = sphi 0, %s16
    %p13 = scmp.ge.s32.totalorder %s12, 4
    %s19 = sphi 0, %s38
    %s20 = sphi 0, %s34
    %s21 = sphi 0, %s30
    %s22 = sphi 0, %s19
    %s23 = sphi 0, %s20
    %s24 = sphi 0, %s21
    %s25 = sphi 0, %s22
    %s26 = sphi 0, %s23
    %s27 = sphi 0, %s24
    %s45 = sphi 0, %s47
    %s48 = sphi 0, %s45
    %s49 = sphi 0, %s48
    %s65 = sphi 0, %s49
    %s73 = sphi 0, %s75
    %s76 = sphi 0, %s73
    %s77 = sphi 0, %s76
    %s93 = sphi 0, %s77
    %s101 = sphi 0, %s103
    %s104 = sphi 0, %s101
    %s105 = sphi 0, %s104
    %s121 = sphi 0, %s105
    %s127 = sphi 0, %s129
    %s130 = sphi 0, %s127
    %s131 = sphi 0, %s130
    %s147 = sphi 0, %s131
    %s153 = sphi 0, %s155
    %s156 = sphi 0, %s153
    %s157 = sphi 0, %s156
    %s173 = sphi 0, %s157
    %s179 = sphi 0, %s181
    %s182 = sphi 0, %s179
    %s183 = sphi 0, %s182
    %s199 = sphi 0, %s183
    %s207 = sphi 0, %s209
    %s210 = sphi 0, %s207
    %s211 = sphi 0, %s210
    %s227 = sphi 0, %s211
  $region4: #{hetero_gnn_forward.3} parent=0 // loop_header_branch
    %15 = sbr.rel (%p13) target = $region8
  $region5: #{hetero_gnn_forward.3} parent=0 // loop_body
    %s17 = ssub.s32 %s12, 1
    %s18 = ssub.s32 %s12, 2
    %s28 = sadd.s32 1, %s21
    %p29 = scmp.ge.s32.totalorder %s28, 1
    %s30 = scalar_select %p29, 0, %s28
    %s31 = sadd.s32 1, %s20
    %s32 = scalar_select %p29, %s31, %s20
    %p33 = scmp.ge.s32.totalorder %s32, 1
    %s34 = scalar_select %p33, 0, %s32
    %s35 = sadd.s32 1, %s19
    %s36 = scalar_select %p33, %s35, %s19
    %p37 = scmp.ge.s32.totalorder %s36, 2
    %s38 = scalar_select %p37, 0, %s36
    %s39 = ssub.s32 %s19, %s38
    %s40 = ssub.s32 %s20, %s34
    %s41 = sor.u32 %s39, %s40
    %s42 = ssub.s32 %s21, %s30
    %s43 = sor.u32 %s41, %s42
    %p44 = scmp.eq.s32.totalorder %s43, 0
    %s46 = sadd.s32 %s45, 1
    %s47 = scalar_select %p44, %s45, %s46
    %p50 = pneg %p44
    %p51 = scmp.eq.s32.totalorder %s12, 1
    %p52 = por %p50, %p51
    %p53 = scmp.ne.s32.totalorder %s45, %s48
    %p54 = scmp.eq.s32.totalorder %s12, 0
    %p55 = por %p53, %p54
    %p56 = scmp.ne.s32.totalorder %s45, %s48
    %p57 = scmp.eq.s32.totalorder %s17, 1
    %p58 = por %p56, %p57
    %p59 = scmp.ne.s32.totalorder %s48, %s49
    %p60 = scmp.eq.s32.totalorder %s17, 0
    %p61 = por %p59, %p60
    %p62 = scmp.ne.s32.totalorder %s48, %s49
    %p63 = scmp.eq.s32.totalorder %s18, 1
    %p64 = por %p62, %p63
    %p66 = scmp.ne.s32.totalorder %s49, %s65
    %p67 = scmp.eq.s32.totalorder %s18, 0
    %p68 = por %p66, %p67
    %s69 = ssub.s32 %s19, %s38
    %s70 = ssub.s32 %s21, %s30
    %s71 = sor.u32 %s69, %s70
    %p72 = scmp.eq.s32.totalorder %s71, 0
    %s74 = sadd.s32 %s73, 1
    %s75 = scalar_select %p72, %s73, %s74
    %p78 = pneg %p72
    %p79 = scmp.eq.s32.totalorder %s12, 1
    %p80 = por %p78, %p79
    %p81 = scmp.ne.s32.totalorder %s73, %s76
    %p82 = scmp.eq.s32.totalorder %s12, 0
    %p83 = por %p81, %p82
    %p84 = scmp.ne.s32.totalorder %s73, %s76
    %p85 = scmp.eq.s32.totalorder %s17, 1
    %p86 = por %p84, %p85
    %p87 = scmp.ne.s32.totalorder %s76, %s77
    %p88 = scmp.eq.s32.totalorder %s17, 0
    %p89 = por %p87, %p88
    %p90 = scmp.ne.s32.totalorder %s76, %s77
    %p91 = scmp.eq.s32.totalorder %s18, 1
    %p92 = por %p90, %p91
    %p94 = scmp.ne.s32.totalorder %s77, %s93
    %p95 = scmp.eq.s32.totalorder %s18, 0
    %p96 = por %p94, %p95
    %s97 = ssub.s32 %s19, %s38
    %s98 = ssub.s32 %s20, %s34
    %s99 = sor.u32 %s97, %s98
    %p100 = scmp.eq.s32.totalorder %s99, 0
    %s102 = sadd.s32 %s101, 1
    %s103 = scalar_select %p100, %s101, %s102
    %p106 = pneg %p100
    %p107 = scmp.eq.s32.totalorder %s12, 1
    %p108 = por %p106, %p107
    %p109 = scmp.ne.s32.totalorder %s101, %s104
    %p110 = scmp.eq.s32.totalorder %s12, 0
    %p111 = por %p109, %p110
    %p112 = scmp.ne.s32.totalorder %s101, %s104
    %p113 = scmp.eq.s32.totalorder %s17, 1
    %p114 = por %p112, %p113
    %p115 = scmp.ne.s32.totalorder %s104, %s105
    %p116 = scmp.eq.s32.totalorder %s17, 0
    %p117 = por %p115, %p116
    %p118 = scmp.ne.s32.totalorder %s104, %s105
    %p119 = scmp.eq.s32.totalorder %s18, 1
    %p120 = por %p118, %p119
    %p122 = scmp.ne.s32.totalorder %s105, %s121
    %p123 = scmp.eq.s32.totalorder %s18, 0
    %p124 = por %p122, %p123
    %s125 = ssub.s32 %s19, %s38
    %p126 = scmp.eq.s32.totalorder %s125, 0
    %s128 = sadd.s32 %s127, 1
    %s129 = scalar_select %p126, %s127, %s128
    %p132 = pneg %p126
    %p133 = scmp.eq.s32.totalorder %s12, 1
    %p134 = por %p132, %p133
    %p135 = scmp.ne.s32.totalorder %s127, %s130
    %p136 = scmp.eq.s32.totalorder %s12, 0
    %p137 = por %p135, %p136
    %p138 = scmp.ne.s32.totalorder %s127, %s130
    %p139 = scmp.eq.s32.totalorder %s17, 1
    %p140 = por %p138, %p139
    %p141 = scmp.ne.s32.totalorder %s130, %s131
    %p142 = scmp.eq.s32.totalorder %s17, 0
    %p143 = por %p141, %p142
    %p144 = scmp.ne.s32.totalorder %s130, %s131
    %p145 = scmp.eq.s32.totalorder %s18, 1
    %p146 = por %p144, %p145
    %p148 = scmp.ne.s32.totalorder %s131, %s147
    %p149 = scmp.eq.s32.totalorder %s18, 0
    %p150 = por %p148, %p149
    %s151 = ssub.s32 %s19, %s38
    %p152 = scmp.eq.s32.totalorder %s151, 0
    %s154 = sadd.s32 %s153, 1
    %s155 = scalar_select %p152, %s153, %s154
    %p158 = pneg %p152
    %p159 = scmp.eq.s32.totalorder %s12, 1
    %p160 = por %p158, %p159
    %p161 = scmp.ne.s32.totalorder %s153, %s156
    %p162 = scmp.eq.s32.totalorder %s12, 0
    %p163 = por %p161, %p162
    %p164 = scmp.ne.s32.totalorder %s153, %s156
    %p165 = scmp.eq.s32.totalorder %s17, 1
    %p166 = por %p164, %p165
    %p167 = scmp.ne.s32.totalorder %s156, %s157
    %p168 = scmp.eq.s32.totalorder %s17, 0
    %p169 = por %p167, %p168
    %p170 = scmp.ne.s32.totalorder %s156, %s157
    %p171 = scmp.eq.s32.totalorder %s18, 1
    %p172 = por %p170, %p171
    %p174 = scmp.ne.s32.totalorder %s157, %s173
    %p175 = scmp.eq.s32.totalorder %s18, 0
    %p176 = por %p174, %p175
    %s177 = ssub.s32 %s19, %s38
    %p178 = scmp.eq.s32.totalorder %s177, 0
    %s180 = sadd.s32 %s179, 1
    %s181 = scalar_select %p178, %s179, %s180
    %p184 = pneg %p178
    %p185 = scmp.eq.s32.totalorder %s12, 1
    %p186 = por %p184, %p185
    %p187 = scmp.ne.s32.totalorder %s179, %s182
    %p188 = scmp.eq.s32.totalorder %s12, 0
    %p189 = por %p187, %p188
    %p190 = scmp.ne.s32.totalorder %s179, %s182
    %p191 = scmp.eq.s32.totalorder %s17, 1
    %p192 = por %p190, %p191
    %p193 = scmp.ne.s32.totalorder %s182, %s183
    %p194 = scmp.eq.s32.totalorder %s17, 0
    %p195 = por %p193, %p194
    %p196 = scmp.ne.s32.totalorder %s182, %s183
    %p197 = scmp.eq.s32.totalorder %s18, 1
    %p198 = por %p196, %p197
    %p200 = scmp.ne.s32.totalorder %s183, %s199
    %p201 = scmp.eq.s32.totalorder %s18, 0
    %p202 = por %p200, %p201
    %s203 = ssub.s32 %s19, %s38
    %s204 = ssub.s32 %s20, %s34
    %s205 = sor.u32 %s203, %s204
    %p206 = scmp.eq.s32.totalorder %s205, 0
    %s208 = sadd.s32 %s207, 1
    %s209 = scalar_select %p206, %s207, %s208
    %p212 = pneg %p206
    %p213 = scmp.eq.s32.totalorder %s12, 1
    %p214 = por %p212, %p213
    %p215 = scmp.ne.s32.totalorder %s207, %s210
    %p216 = scmp.eq.s32.totalorder %s12, 0
    %p217 = por %p215, %p216
    %p218 = scmp.ne.s32.totalorder %s207, %s210
    %p219 = scmp.eq.s32.totalorder %s17, 1
    %p220 = por %p218, %p219
    %p221 = scmp.ne.s32.totalorder %s210, %s211
    %p222 = scmp.eq.s32.totalorder %s17, 0
    %p223 = por %p221, %p222
    %p224 = scmp.ne.s32.totalorder %s210, %s211
    %p225 = scmp.eq.s32.totalorder %s18, 1
    %p226 = por %p224, %p225
    %p228 = scmp.ne.s32.totalorder %s211, %s227
    %p229 = scmp.eq.s32.totalorder %s18, 0
    %p230 = por %p228, %p229
    %p231 = scmp.le.s32.totalorder 1, %s12
    %p232 = scmp.lt.s32.totalorder %s12, 3
    %p233 = pnand %p231, %p232
    %p234 = pneg %p233
    // Predicated region
    $region9: #{hetero_gnn_forward.3} parent=5 // pred_check
      _
    $region10: #{hetero_gnn_forward.3} parent=5 // pred_check_branch
      %236 = sbr.rel (%p233) target = $region12
    $region11: #{hetero_gnn_forward.3} parent=5 // pred_region
      %s237 = ssub.s32 %s12, 1
    $region12: #{hetero_gnn_forward.3} parent=5 // pred_fallthru
      _
    %p238 = scmp.lt.s32.totalorder %s12, 2
    // Predicated region
    $region13: #{hetero_gnn_forward.3} parent=5 // pred_check
      %p239 = pneg %p238
    $region14: #{hetero_gnn_forward.3} parent=5 // pred_check_branch
      %241 = sbr.rel (%p239) target = $region16
    $region15: #{hetero_gnn_forward.3} parent=5 // pred_region
      // Predicated region
      $region17: #{hetero_gnn_forward.3} parent=15 // pred_check
        %p242 = pneg %p55
      $region18: #{hetero_gnn_forward.3} parent=15 // pred_check_branch
        %244 = sbr.rel (%p242) target = $region20
      $region19: #{hetero_gnn_forward.3} parent=15 // pred_region
        %s245 = smul.u32 16, %s20
        %p246 = scmp.lt.s32.totalorder %s19, 1
        %s247 = scalar_select %p246, %s19, 1
        %p248 = scmp.lt.s32.totalorder %s245, 15
        %s249 = scalar_select %p248, %s245, 15
        %p250 = scmp.lt.s32.totalorder %s21, 0
        %s251 = scalar_select %p250, %s21, 0
        %s252 = sadd.s32 %s251, %s249
        %s253 = smul.addr %s247, 16
        %s254 = sadd.s32 %s252, %s253
        %s255 = smul.addr %s254, 4
        %s256 = scalar_lea.vmem %s0, %s255
        %s257 = smul.u32 16, %s20
      $region20: #{hetero_gnn_forward.3} parent=15 // pred_fallthru
        _
      // Predicated region
      $region21: #{hetero_gnn_forward.3} parent=15 // pred_check
        %p258 = pneg %p83
      $region22: #{hetero_gnn_forward.3} parent=15 // pred_check_branch
        %260 = sbr.rel (%p258) target = $region24
      $region23: #{hetero_gnn_forward.3} parent=15 // pred_region
        %s261 = smul.u32 16, %s21
        %p262 = scmp.lt.s32.totalorder %s19, 1
        %s263 = scalar_select %p262, %s19, 1
        %p264 = scmp.lt.s32.totalorder %s261, 15
        %s265 = scalar_select %p264, %s261, 15
        %s266 = smul.addr %s263, 16
        %s267 = sadd.s32 %s265, %s266
        %s268 = smul.addr %s267, 4
        %s269 = scalar_lea.vmem %s1, %s268
        %s270 = smul.u32 16, %s21
      $region24: #{hetero_gnn_forward.3} parent=15 // pred_fallthru
        _
      // Predicated region
      $region25: #{hetero_gnn_forward.3} parent=15 // pred_check
        %p271 = pneg %p111
      $region26: #{hetero_gnn_forward.3} parent=15 // pred_check_branch
        %273 = sbr.rel (%p271) target = $region28
      $region27: #{hetero_gnn_forward.3} parent=15 // pred_region
        %s274 = smul.u32 16, %s20
        %p275 = scmp.lt.s32.totalorder %s19, 1
        %s276 = scalar_select %p275, %s19, 1
        %p277 = scmp.lt.s32.totalorder %s274, 15
        %s278 = scalar_select %p277, %s274, 15
        %s279 = smul.addr %s276, 16
        %s280 = sadd.s32 %s278, %s279
        %s281 = smul.addr %s280, 4
        %s282 = scalar_lea.vmem %s2, %s281
        %s283 = smul.u32 16, %s20
      $region28: #{hetero_gnn_forward.3} parent=15 // pred_fallthru
        _
      // Predicated region
      $region29: #{hetero_gnn_forward.3} parent=15 // pred_check
        %p284 = pneg %p137
      $region30: #{hetero_gnn_forward.3} parent=15 // pred_check_branch
        %286 = sbr.rel (%p284) target = $region32
      $region31: #{hetero_gnn_forward.3} parent=15 // pred_region
        %p287 = scmp.lt.s32.totalorder %s19, 1
        %s288 = scalar_select %p287, %s19, 1
        %s289 = smul.addr %s288, 16
        %s290 = smul.addr %s289, 4
        %s291 = scalar_lea.vmem %s3, %s290
      $region32: #{hetero_gnn_forward.3} parent=15 // pred_fallthru
        _
      // Predicated region
      $region33: #{hetero_gnn_forward.3} parent=15 // pred_check
        %p292 = pneg %p163
      $region34: #{hetero_gnn_forward.3} parent=15 // pred_check_branch
        %294 = sbr.rel (%p292) target = $region36
      $region35: #{hetero_gnn_forward.3} parent=15 // pred_region
        %p295 = scmp.lt.s32.totalorder %s19, 1
        %s296 = scalar_select %p295, %s19, 1
        %s297 = smul.addr %s296, 16
        %s298 = smul.addr %s297, 4
        %s299 = scalar_lea.vmem %s4, %s298
      $region36: #{hetero_gnn_forward.3} parent=15 // pred_fallthru
        _
      // Predicated region
      $region37: #{hetero_gnn_forward.3} parent=15 // pred_check
        %p300 = pneg %p189
      $region38: #{hetero_gnn_forward.3} parent=15 // pred_check_branch
        %302 = sbr.rel (%p300) target = $region40
      $region39: #{hetero_gnn_forward.3} parent=15 // pred_region
        %p303 = scmp.lt.s32.totalorder %s19, 1
        %s304 = scalar_select %p303, %s19, 1
        %s305 = scalar_lea.vmem %s5, %s304
      $region40: #{hetero_gnn_forward.3} parent=15 // pred_fallthru
        _
    $region16: #{hetero_gnn_forward.3} parent=5 // pred_fallthru
      _
    %p306 = scmp.le.s32.totalorder 1, %s12
    %p307 = scmp.lt.s32.totalorder %s12, 3
    %p308 = pnand %p306, %p307
    %p309 = pneg %p308
    // Predicated region
    $region41: #{hetero_gnn_forward.3} parent=5 // pred_check
      _
    $region42: #{hetero_gnn_forward.3} parent=5 // pred_check_branch
      %311 = sbr.rel (%p308) target = $region44
    $region43: #{hetero_gnn_forward.3} parent=5 // pred_region
      %s312 = ssub.s32 %s12, 1
      %s313 = smul.u32 16, %s23
      %p314 = scmp.lt.s32.totalorder %s22, 1
      %s315 = scalar_select %p314, %s22, 1
      %p316 = scmp.lt.s32.totalorder %s313, 15
      %s317 = scalar_select %p316, %s313, 15
      %p318 = scmp.lt.s32.totalorder %s24, 0
      %s319 = scalar_select %p318, %s24, 0
      %s320 = sadd.s32 %s319, %s317
      %s321 = smul.addr %s315, 16
      %s322 = sadd.s32 %s320, %s321
      %s323 = smul.addr %s322, 4
      %s324 = scalar_lea.vmem %s0, %s323
      %p325 = pneg %p61
      %p326 = pneg %p58
      %s327 = smul.u32 16, %s24
      %p328 = scmp.lt.s32.totalorder %s22, 1
      %s329 = scalar_select %p328, %s22, 1
      %p330 = scmp.lt.s32.totalorder %s327, 15
      %s331 = scalar_select %p330, %s327, 15
      %s332 = smul.addr %s329, 16
      %s333 = sadd.s32 %s331, %s332
      %s334 = smul.addr %s333, 4
      %s335 = scalar_lea.vmem %s1, %s334
      %p336 = pneg %p89
      %p337 = pneg %p86
      %s338 = smul.u32 16, %s23
      %p339 = scmp.lt.s32.totalorder %s22, 1
      %s340 = scalar_select %p339, %s22, 1
      %p341 = scmp.lt.s32.totalorder %s338, 15
      %s342 = scalar_select %p341, %s338, 15
      %s343 = smul.addr %s340, 16
      %s344 = sadd.s32 %s342, %s343
      %s345 = smul.addr %s344, 4
      %s346 = scalar_lea.vmem %s2, %s345
      %p347 = pneg %p117
      %p348 = pneg %p114
      %p349 = scmp.lt.s32.totalorder %s22, 1
      %s350 = scalar_select %p349, %s22, 1
      %s351 = smul.addr %s350, 16
      %s352 = smul.addr %s351, 4
      %s353 = scalar_lea.vmem %s3, %s352
      %p354 = pneg %p143
      %p355 = pneg %p140
      %p356 = scmp.lt.s32.totalorder %s22, 1
      %s357 = scalar_select %p356, %s22, 1
      %s358 = smul.addr %s357, 16
      %s359 = smul.addr %s358, 4
      %s360 = scalar_lea.vmem %s4, %s359
      %p361 = pneg %p169
      %p362 = pneg %p166
      %p363 = scmp.lt.s32.totalorder %s22, 1
      %s364 = scalar_select %p363, %s22, 1
      %s365 = scalar_lea.vmem %s5, %s364
      %p366 = pneg %p195
      %p367 = pneg %p192
      %p368 = pneg %p223
      %p369 = pneg %p220
      %s370 = smul.u32 16, %s23
      %p371 = scmp.lt.s32.totalorder %s22, 1
      %s372 = scalar_select %p371, %s22, 1
      %p373 = scmp.lt.s32.totalorder %s370, 15
      %s374 = scalar_select %p373, %s370, 15
      %s375 = smul.addr %s372, 16
      %s376 = sadd.s32 %s374, %s375
      %s377 = smul.addr %s376, 4
      %s378 = scalar_lea.vmem %s6, %s377
      %s379 = smul.u32 16, %s23
      %p380 = scmp.lt.s32.totalorder %s22, 1
      %s381 = scalar_select %p380, %s22, 1
      %p382 = scmp.lt.s32.totalorder %s379, 15
      %s383 = scalar_select %p382, %s379, 15
      %p384 = scmp.lt.s32.totalorder %s24, 0
      %s385 = scalar_select %p384, %s24, 0
      %s386 = sadd.s32 %s385, %s383
      %s387 = smul.addr %s381, 16
      %s388 = sadd.s32 %s386, %s387
      %s389 = smul.addr %s388, 4
      %s390 = scalar_lea.vmem %s0, %s389
      %s391 = smul.u32 16, %s23
      %s392 = smul.u32 16, %s24
      %p393 = scmp.lt.s32.totalorder %s22, 1
      %s394 = scalar_select %p393, %s22, 1
      %p395 = scmp.lt.s32.totalorder %s392, 15
      %s396 = scalar_select %p395, %s392, 15
      %s397 = smul.addr %s394, 16
      %s398 = sadd.s32 %s396, %s397
      %s399 = smul.addr %s398, 4
      %s400 = scalar_lea.vmem %s1, %s399
      %s401 = smul.u32 16, %s24
      %s402 = smul.u32 16, %s23
      %p403 = scmp.lt.s32.totalorder %s22, 1
      %s404 = scalar_select %p403, %s22, 1
      %p405 = scmp.lt.s32.totalorder %s402, 15
      %s406 = scalar_select %p405, %s402, 15
      %s407 = smul.addr %s404, 16
      %s408 = sadd.s32 %s406, %s407
      %s409 = smul.addr %s408, 4
      %s410 = scalar_lea.vmem %s2, %s409
      %s411 = smul.u32 16, %s23
      %p412 = scmp.lt.s32.totalorder %s22, 1
      %s413 = scalar_select %p412, %s22, 1
      %s414 = smul.addr %s413, 16
      %s415 = smul.addr %s414, 4
      %s416 = scalar_lea.vmem %s3, %s415
      %p417 = scmp.lt.s32.totalorder %s22, 1
      %s418 = scalar_select %p417, %s22, 1
      %s419 = smul.addr %s418, 16
      %s420 = smul.addr %s419, 4
      %s421 = scalar_lea.vmem %s4, %s420
      %p422 = scmp.lt.s32.totalorder %s22, 1
      %s423 = scalar_select %p422, %s22, 1
      %s424 = scalar_lea.vmem %s5, %s423
      %s425 = smul.u32 16, %s23
      %p426 = scmp.lt.s32.totalorder %s22, 1
      %s427 = scalar_select %p426, %s22, 1
      %p428 = scmp.lt.s32.totalorder %s425, 15
      %s429 = scalar_select %p428, %s425, 15
      %s430 = smul.addr %s427, 16
      %s431 = sadd.s32 %s429, %s430
      %s432 = smul.addr %s431, 4
      %s433 = scalar_lea.vmem %s6, %s432
      %s434 = smul.u32 16, %s23
      %p436 = scmp.eq.s32.totalorder %s24, 0
      // Predicated region
      $region45: #{hetero_gnn_forward.3} parent=43 // pred_check
        %p437 = pneg %p436
      $region46: #{hetero_gnn_forward.3} parent=43 // pred_check_branch
        %439 = sbr.rel (%p437) target = $region48
      $region47: #{hetero_gnn_forward.3} parent=43 // pred_region
        %v440 = vld [vmem:[%s410] sm:$0xf]
        %v441 = vld [vmem:[%s410 + $0x4] sm:$0xf]
        %v442 = vld [vmem:[%s410 + $0x8] sm:$0xf]
        %v443 = vld [vmem:[%s410 + $0xc] sm:$0xf]
        %v444 = vld [vmem:[%s410 + $0x10] sm:$0xf]
        %v445 = vld [vmem:[%s410 + $0x14] sm:$0xf]
        %v446 = vld [vmem:[%s410 + $0x18] sm:$0xf]
        %v447 = vld [vmem:[%s410 + $0x1c] sm:$0xf]
        %v448 = vld [vmem:[%s410 + $0x20] sm:$0xf]
        %v449 = vld [vmem:[%s410 + $0x24] sm:$0xf]
        %v450 = vld [vmem:[%s410 + $0x28] sm:$0xf]
        %v451 = vld [vmem:[%s410 + $0x2c] sm:$0xf]
        %v452 = vld [vmem:[%s410 + $0x30] sm:$0xf]
        %v453 = vld [vmem:[%s410 + $0x34] sm:$0xf]
        %v454 = vld [vmem:[%s410 + $0x38] sm:$0xf]
        %v455 = vld [vmem:[%s410 + $0x3c] sm:$0xf]
        %v456 = vld [vmem:[%s421] sm:$0xf]
        %v457 = vld [vmem:[%s421 + $0x4] sm:$0xf]
        %v458 = vld [vmem:[%s421 + $0x8] sm:$0xf]
        %v459 = vld [vmem:[%s421 + $0xc] sm:$0xf]
        %v460 = vld [vmem:[%s421 + $0x10] sm:$0xf]
        %v461 = vld [vmem:[%s421 + $0x14] sm:$0xf]
        %v462 = vld [vmem:[%s421 + $0x18] sm:$0xf]
        %v463 = vld [vmem:[%s421 + $0x1c] sm:$0xf]
        %v464 = vld [vmem:[%s421 + $0x20] sm:$0xf]
        %v465 = vld [vmem:[%s421 + $0x24] sm:$0xf]
        %v466 = vld [vmem:[%s421 + $0x28] sm:$0xf]
        %v467 = vld [vmem:[%s421 + $0x2c] sm:$0xf]
        %v468 = vld [vmem:[%s421 + $0x30] sm:$0xf]
        %v469 = vld [vmem:[%s421 + $0x34] sm:$0xf]
        %v470 = vld [vmem:[%s421 + $0x38] sm:$0xf]
        %v471 = vld [vmem:[%s421 + $0x3c] sm:$0xf]
        %v472 = vld [vmem:[%s424] sm:$0x1]
        %v474 = vlaneseq
        %v475 = vshrl.u32 %v474, 7
        %v476 = vsub.s32 0, %v475
        %v477 = vrot.slane %v472, %v476
        %v495 = vunpack.c.l.b16 %v440
        %v496 = vunpack.c.l.b16 %v441
        %v497 = vunpack.c.l.b16 %v442
        %v498 = vunpack.c.l.b16 %v443
        %v499 = vunpack.c.l.b16 %v444
        %v500 = vunpack.c.l.b16 %v445
        %v501 = vunpack.c.l.b16 %v446
        %v502 = vunpack.c.l.b16 %v447
        %v503 = vunpack.c.l.b16 %v448
        %v504 = vunpack.c.l.b16 %v449
        %v505 = vunpack.c.l.b16 %v450
        %v506 = vunpack.c.l.b16 %v451
        %v507 = vunpack.c.l.b16 %v452
        %v508 = vunpack.c.l.b16 %v453
        %v509 = vunpack.c.l.b16 %v454
        %v510 = vunpack.c.l.b16 %v455
        %v511 = vpack.c.b16 %v496, %v495
        %v512 = vpack.c.b16 %v498, %v497
        %v513 = vpack.c.b16 %v500, %v499
        %v514 = vpack.c.b16 %v502, %v501
        %v515 = vpack.c.b16 %v504, %v503
        %v516 = vpack.c.b16 %v506, %v505
        %v517 = vpack.c.b16 %v508, %v507
        %v518 = vpack.c.b16 %v510, %v509
        %v543 = vunpack.c.l.b16 %v456
        %v544 = vunpack.c.l.b16 %v457
        %v545 = vunpack.c.l.b16 %v458
        %v546 = vunpack.c.l.b16 %v459
        %v547 = vunpack.c.l.b16 %v460
        %v548 = vunpack.c.l.b16 %v461
        %v549 = vunpack.c.l.b16 %v462
        %v550 = vunpack.c.l.b16 %v463
        %v551 = vunpack.c.l.b16 %v464
        %v552 = vunpack.c.l.b16 %v465
        %v553 = vunpack.c.l.b16 %v466
        %v554 = vunpack.c.l.b16 %v467
        %v555 = vunpack.c.l.b16 %v468
        %v556 = vunpack.c.l.b16 %v469
        %v557 = vunpack.c.l.b16 %v470
        %v558 = vunpack.c.l.b16 %v471
        %v559 = vpack.c.b16 %v544, %v543
        %v560 = vpack.c.b16 %v546, %v545
        %v561 = vpack.c.b16 %v548, %v547
        %v562 = vpack.c.b16 %v550, %v549
        %v563 = vpack.c.b16 %v552, %v551
        %v564 = vpack.c.b16 %v554, %v553
        %v565 = vpack.c.b16 %v556, %v555
        %v566 = vpack.c.b16 %v558, %v557
        %575 = vmatprep.subr.bf16.mxu0 0
        %576 = vmatpush1.bf16.msra.mxu0 %v559
        %577 = vmatprep.subr.bf16.mxu0 0
        %578 = vmatpush1.bf16.msra.mxu0 %v560
        %579 = vmatprep.subr.bf16.mxu0 0
        %580 = vmatpush1.bf16.msra.mxu0 %v561
        %581 = vmatprep.subr.bf16.mxu0 0
        %582 = vmatpush1.bf16.msra.mxu0 %v562
        %583 = vmatprep.subr.bf16.mxu0 0
        %584 = vmatpush1.bf16.msra.mxu0 %v563
        %585 = vmatprep.subr.bf16.mxu0 0
        %586 = vmatpush1.bf16.msra.mxu0 %v564
        %587 = vmatprep.subr.bf16.mxu0 0
        %588 = vmatpush1.bf16.msra.mxu0 %v565
        %589 = vmatprep.subr.bf16.mxu0 0
        %590 = vmatpush1.bf16.msra.mxu0 %v566
        %591 = vmatprep.subr.bf16.mxu0 0
        %592 = vmatpush1.bf16.msra.mxu0 0
        %593 = vmatprep.subr.bf16.mxu0 0
        %594 = vmatpush1.bf16.msra.mxu0 0
        %595 = vmatprep.subr.bf16.mxu0 0
        %596 = vmatpush1.bf16.msra.mxu0 0
        %597 = vmatprep.subr.bf16.mxu0 0
        %598 = vmatpush1.bf16.msra.mxu0 0
        %599 = vmatprep.subr.bf16.mxu0 0
        %600 = vmatpush1.bf16.msra.mxu0 0
        %601 = vmatprep.subr.bf16.mxu0 0
        %602 = vmatpush1.bf16.msra.mxu0 0
        %603 = vmatprep.subr.bf16.mxu0 0
        %604 = vmatpush1.bf16.msra.mxu0 0
        %605 = vmatprep.subr.bf16.mxu0 0
        %606 = vmatpush1.bf16.msra.mxu0 0
        %607 = vmatprep.mubr.bf16.mxu0 0
        %608 = vmatmul.mubr.bf16.gmra.mrb[0].mxu0 %v511
        %v609 = vpop.f32.mrb[0].mxu0
        %v610 = vadd.f32 %v477, %v609
        %v611 = vpop.f32.mrb[0].mxu0
        %v612 = vpop.f32.mrb[0].mxu0
        %v613 = vadd.f32 %v477, %v612
        %v614 = vpop.f32.mrb[0].mxu0
        %615 = vmatprep.mubr.bf16.mxu0 0
        %616 = vmatmul.mubr.bf16.gmra.mrb[0].mxu0 %v512
        %v617 = vpop.f32.mrb[0].mxu0
        %v618 = vadd.f32 %v477, %v617
        %v619 = vpop.f32.mrb[0].mxu0
        %v620 = vpop.f32.mrb[0].mxu0
        %v621 = vadd.f32 %v477, %v620
        %v622 = vpop.f32.mrb[0].mxu0
        %623 = vmatprep.mubr.bf16.mxu0 0
        %624 = vmatmul.mubr.bf16.gmra.mrb[0].mxu0 %v513
        %v625 = vpop.f32.mrb[0].mxu0
        %v626 = vadd.f32 %v477, %v625
        %v627 = vpop.f32.mrb[0].mxu0
        %v628 = vpop.f32.mrb[0].mxu0
        %v629 = vadd.f32 %v477, %v628
        %v630 = vpop.f32.mrb[0].mxu0
        %631 = vmatprep.mubr.bf16.mxu0 0
        %632 = vmatmul.mubr.bf16.gmra.mrb[0].mxu0 %v514
        %v633 = vpop.f32.mrb[0].mxu0
        %v634 = vadd.f32 %v477, %v633
        %v635 = vpop.f32.mrb[0].mxu0
        %v636 = vpop.f32.mrb[0].mxu0
        %v637 = vadd.f32 %v477, %v636
        %v638 = vpop.f32.mrb[0].mxu0
        %639 = vmatprep.mubr.bf16.mxu0 0
        %640 = vmatmul.mubr.bf16.gmra.mrb[0].mxu0 %v515
        %v641 = vpop.f32.mrb[0].mxu0
        %v642 = vadd.f32 %v477, %v641
        %v643 = vpop.f32.mrb[0].mxu0
        %v644 = vpop.f32.mrb[0].mxu0
        %v645 = vadd.f32 %v477, %v644
        %v646 = vpop.f32.mrb[0].mxu0
        %647 = vmatprep.mubr.bf16.mxu0 0
        %648 = vmatmul.mubr.bf16.gmra.mrb[0].mxu0 %v516
        %v649 = vpop.f32.mrb[0].mxu0
        %v650 = vadd.f32 %v477, %v649
        %v651 = vpop.f32.mrb[0].mxu0
        %v652 = vpop.f32.mrb[0].mxu0
        %v653 = vadd.f32 %v477, %v652
        %v654 = vpop.f32.mrb[0].mxu0
        %655 = vmatprep.mubr.bf16.mxu0 0
        %656 = vmatmul.mubr.bf16.gmra.mrb[0].mxu0 %v517
        %v657 = vpop.f32.mrb[0].mxu0
        %v658 = vadd.f32 %v477, %v657
        %v659 = vpop.f32.mrb[0].mxu0
        %v660 = vpop.f32.mrb[0].mxu0
        %v661 = vadd.f32 %v477, %v660
        %v662 = vpop.f32.mrb[0].mxu0
        %663 = vmatprep.mubr.bf16.mxu0 0
        %664 = vmatmul.mubr.bf16.gmra.mrb[0].mxu0 %v518
        %v665 = vpop.f32.mrb[0].mxu0
        %v666 = vadd.f32 %v477, %v665
        %v667 = vpop.f32.mrb[0].mxu0
        %v668 = vpop.f32.mrb[0].mxu0
        %v669 = vadd.f32 %v477, %v668
        %v670 = vpop.f32.mrb[0].mxu0
        %671 = vdwg.mxu0
        %672 = vst [vmem:[#allocation2] sm:$0xff] %v610
        %673 = vst [vmem:[#allocation2 + $0x8] sm:$0xff] %v613
        %674 = vst [vmem:[#allocation2 + $0x10] sm:$0xff] %v618
        %675 = vst [vmem:[#allocation2 + $0x18] sm:$0xff] %v621
        %676 = vst [vmem:[#allocation2 + $0x20] sm:$0xff] %v626
        %677 = vst [vmem:[#allocation2 + $0x28] sm:$0xff] %v629
        %678 = vst [vmem:[#allocation2 + $0x30] sm:$0xff] %v634
        %679 = vst [vmem:[#allocation2 + $0x38] sm:$0xff] %v637
        %680 = vst [vmem:[#allocation2 + $0x40] sm:$0xff] %v642
        %681 = vst [vmem:[#allocation2 + $0x48] sm:$0xff] %v645
        %682 = vst [vmem:[#allocation2 + $0x50] sm:$0xff] %v650
        %683 = vst [vmem:[#allocation2 + $0x58] sm:$0xff] %v653
        %684 = vst [vmem:[#allocation2 + $0x60] sm:$0xff] %v658
        %685 = vst [vmem:[#allocation2 + $0x68] sm:$0xff] %v661
        %686 = vst [vmem:[#allocation2 + $0x70] sm:$0xff] %v666
        %687 = vst [vmem:[#allocation2 + $0x78] sm:$0xff] %v669
      $region48: #{hetero_gnn_forward.3} parent=43 // pred_fallthru
        _
      %v688 = vld [vmem:[%s400] sm:$0xf]
      %v689 = vld [vmem:[%s400 + $0x4] sm:$0xf]
      %v690 = vld [vmem:[%s400 + $0x8] sm:$0xf]
      %v691 = vld [vmem:[%s400 + $0xc] sm:$0xf]
      %v692 = vld [vmem:[%s400 + $0x10] sm:$0xf]
      %v693 = vld [vmem:[%s400 + $0x14] sm:$0xf]
      %v694 = vld [vmem:[%s400 + $0x18] sm:$0xf]
      %v695 = vld [vmem:[%s400 + $0x1c] sm:$0xf]
      %v696 = vld [vmem:[%s400 + $0x20] sm:$0xf]
      %v697 = vld [vmem:[%s400 + $0x24] sm:$0xf]
      %v698 = vld [vmem:[%s400 + $0x28] sm:$0xf]
      %v699 = vld [vmem:[%s400 + $0x2c] sm:$0xf]
      %v700 = vld [vmem:[%s400 + $0x30] sm:$0xf]
      %v701 = vld [vmem:[%s400 + $0x34] sm:$0xf]
      %v702 = vld [vmem:[%s400 + $0x38] sm:$0xf]
      %v703 = vld [vmem:[%s400 + $0x3c] sm:$0xf]
      %v704 = vld [vmem:[%s416] sm:$0xf]
      %v705 = vld [vmem:[%s416 + $0x4] sm:$0xf]
      %v706 = vld [vmem:[%s416 + $0x8] sm:$0xf]
      %v707 = vld [vmem:[%s416 + $0xc] sm:$0xf]
      %v708 = vld [vmem:[%s416 + $0x10] sm:$0xf]
      %v709 = vld [vmem:[%s416 + $0x14] sm:$0xf]
      %v710 = vld [vmem:[%s416 + $0x18] sm:$0xf]
      %v711 = vld [vmem:[%s416 + $0x1c] sm:$0xf]
      %v712 = vld [vmem:[%s416 + $0x20] sm:$0xf]
      %v713 = vld [vmem:[%s416 + $0x24] sm:$0xf]
      %v714 = vld [vmem:[%s416 + $0x28] sm:$0xf]
      %v715 = vld [vmem:[%s416 + $0x2c] sm:$0xf]
      %v716 = vld [vmem:[%s416 + $0x30] sm:$0xf]
      %v717 = vld [vmem:[%s416 + $0x34] sm:$0xf]
      %v718 = vld [vmem:[%s416 + $0x38] sm:$0xf]
      %v719 = vld [vmem:[%s416 + $0x3c] sm:$0xf]
      %v736 = vunpack.c.l.b16 %v688
      %v737 = vunpack.c.l.b16 %v689
      %v738 = vunpack.c.l.b16 %v690
      %v739 = vunpack.c.l.b16 %v691
      %v740 = vunpack.c.l.b16 %v692
      %v741 = vunpack.c.l.b16 %v693
      %v742 = vunpack.c.l.b16 %v694
      %v743 = vunpack.c.l.b16 %v695
      %v744 = vunpack.c.l.b16 %v696
      %v745 = vunpack.c.l.b16 %v697
      %v746 = vunpack.c.l.b16 %v698
      %v747 = vunpack.c.l.b16 %v699
      %v748 = vunpack.c.l.b16 %v700
      %v749 = vunpack.c.l.b16 %v701
      %v750 = vunpack.c.l.b16 %v702
      %v751 = vunpack.c.l.b16 %v703
      %v752 = vpack.c.b16 %v737, %v736
      %v753 = vpack.c.b16 %v739, %v738
      %v754 = vpack.c.b16 %v741, %v740
      %v755 = vpack.c.b16 %v743, %v742
      %v756 = vpack.c.b16 %v745, %v744
      %v757 = vpack.c.b16 %v747, %v746
      %v758 = vpack.c.b16 %v749, %v748
      %v759 = vpack.c.b16 %v751, %v750
      %v784 = vunpack.c.l.b16 %v704
      %v785 = vunpack.c.l.b16 %v705
      %v786 = vunpack.c.l.b16 %v706
      %v787 = vunpack.c.l.b16 %v707
      %v788 = vunpack.c.l.b16 %v708
      %v789 = vunpack.c.l.b16 %v709
      %v790 = vunpack.c.l.b16 %v710
      %v791 = vunpack.c.l.b16 %v711
      %v792 = vunpack.c.l.b16 %v712
      %v793 = vunpack.c.l.b16 %v713
      %v794 = vunpack.c.l.b16 %v714
      %v795 = vunpack.c.l.b16 %v715
      %v796 = vunpack.c.l.b16 %v716
      %v797 = vunpack.c.l.b16 %v717
      %v798 = vunpack.c.l.b16 %v718
      %v799 = vunpack.c.l.b16 %v719
      %v800 = vpack.c.b16 %v785, %v784
      %v801 = vpack.c.b16 %v787, %v786
      %v802 = vpack.c.b16 %v789, %v788
      %v803 = vpack.c.b16 %v791, %v790
      %v804 = vpack.c.b16 %v793, %v792
      %v805 = vpack.c.b16 %v795, %v794
      %v806 = vpack.c.b16 %v797, %v796
      %v807 = vpack.c.b16 %v799, %v798
      %816 = vmatprep.subr.bf16.mxu0 0
      %817 = vmatpush1.bf16.msra.mxu0 %v800
      %818 = vmatprep.subr.bf16.mxu0 0
      %819 = vmatpush1.bf16.msra.mxu0 %v801
      %820 = vmatprep.subr.bf16.mxu0 0
      %821 = vmatpush1.bf16.msra.mxu0 %v802
      %822 = vmatprep.subr.bf16.mxu0 0
      %823 = vmatpush1.bf16.msra.mxu0 %v803
      %824 = vmatprep.subr.bf16.mxu0 0
      %825 = vmatpush1.bf16.msra.mxu0 %v804
      %826 = vmatprep.subr.bf16.mxu0 0
      %827 = vmatpush1.bf16.msra.mxu0 %v805
      %828 = vmatprep.subr.bf16.mxu0 0
      %829 = vmatpush1.bf16.msra.mxu0 %v806
      %830 = vmatprep.subr.bf16.mxu0 0
      %831 = vmatpush1.bf16.msra.mxu0 %v807
      %832 = vmatprep.subr.bf16.mxu0 0
      %833 = vmatpush1.bf16.msra.mxu0 0
      %834 = vmatprep.subr.bf16.mxu0 0
      %835 = vmatpush1.bf16.msra.mxu0 0
      %836 = vmatprep.subr.bf16.mxu0 0
      %837 = vmatpush1.bf16.msra.mxu0 0
      %838 = vmatprep.subr.bf16.mxu0 0
      %839 = vmatpush1.bf16.msra.mxu0 0
      %840 = vmatprep.subr.bf16.mxu0 0
      %841 = vmatpush1.bf16.msra.mxu0 0
      %842 = vmatprep.subr.bf16.mxu0 0
      %843 = vmatpush1.bf16.msra.mxu0 0
      %844 = vmatprep.subr.bf16.mxu0 0
      %845 = vmatpush1.bf16.msra.mxu0 0
      %846 = vmatprep.subr.bf16.mxu0 0
      %847 = vmatpush1.bf16.msra.mxu0 0
      %848 = vmatprep.mubr.bf16.mxu0 0
      %849 = vmatmul.mubr.bf16.gmra.mrb[0].mxu0 %v752
      %v850 = vpop.f32.mrb[0].mxu0
      %v851 = vadd.f32 0.0, %v850
      %v852 = vpop.f32.mrb[0].mxu0
      %v853 = vpop.f32.mrb[0].mxu0
      %v854 = vadd.f32 0.0, %v853
      %v855 = vpop.f32.mrb[0].mxu0
      %856 = vmatprep.mubr.bf16.mxu0 0
      %857 = vmatmul.mubr.bf16.gmra.mrb[0].mxu0 %v753
      %v858 = vpop.f32.mrb[0].mxu0
      %v859 = vadd.f32 0.0, %v858
      %v860 = vpop.f32.mrb[0].mxu0
      %v861 = vpop.f32.mrb[0].mxu0
      %v862 = vadd.f32 0.0, %v861
      %v863 = vpop.f32.mrb[0].mxu0
      %864 = vmatprep.mubr.bf16.mxu0 0
      %865 = vmatmul.mubr.bf16.gmra.mrb[0].mxu0 %v754
      %v866 = vpop.f32.mrb[0].mxu0
      %v867 = vadd.f32 0.0, %v866
      %v868 = vpop.f32.mrb[0].mxu0
      %v869 = vpop.f32.mrb[0].mxu0
      %v870 = vadd.f32 0.0, %v869
      %v871 = vpop.f32.mrb[0].mxu0
      %872 = vmatprep.mubr.bf16.mxu0 0
      %873 = vmatmul.mubr.bf16.gmra.mrb[0].mxu0 %v755
      %v874 = vpop.f32.mrb[0].mxu0
      %v875 = vadd.f32 0.0, %v874
      %v876 = vpop.f32.mrb[0].mxu0
      %v877 = vpop.f32.mrb[0].mxu0
      %v878 = vadd.f32 0.0, %v877
      %v879 = vpop.f32.mrb[0].mxu0
      %880 = vmatprep.mubr.bf16.mxu0 0
      %881 = vmatmul.mubr.bf16.gmra.mrb[0].mxu0 %v756
      %v882 = vpop.f32.mrb[0].mxu0
      %v883 = vadd.f32 0.0, %v882
      %v884 = vpop.f32.mrb[0].mxu0
      %v885 = vpop.f32.mrb[0].mxu0
      %v886 = vadd.f32 0.0, %v885
      %v887 = vpop.f32.mrb[0].mxu0
      %888 = vmatprep.mubr.bf16.mxu0 0
      %889 = vmatmul.mubr.bf16.gmra.mrb[0].mxu0 %v757
      %v890 = vpop.f32.mrb[0].mxu0
      %v891 = vadd.f32 0.0, %v890
      %v892 = vpop.f32.mrb[0].mxu0
      %v893 = vpop.f32.mrb[0].mxu0
      %v894 = vadd.f32 0.0, %v893
      %v895 = vpop.f32.mrb[0].mxu0
      %896 = vmatprep.mubr.bf16.mxu0 0
      %897 = vmatmul.mubr.bf16.gmra.mrb[0].mxu0 %v758
      %v898 = vpop.f32.mrb[0].mxu0
      %v899 = vadd.f32 0.0, %v898
      %v900 = vpop.f32.mrb[0].mxu0
      %v901 = vpop.f32.mrb[0].mxu0
      %v902 = vadd.f32 0.0, %v901
      %v903 = vpop.f32.mrb[0].mxu0
      %904 = vmatprep.mubr.bf16.mxu0 0
      %905 = vmatmul.mubr.bf16.gmra.mrb[0].mxu0 %v759
      %v906 = vpop.f32.mrb[0].mxu0
      %v907 = vadd.f32 0.0, %v906
      %v908 = vpop.f32.mrb[0].mxu0
      %v909 = vpop.f32.mrb[0].mxu0
      %v910 = vadd.f32 0.0, %v909
      %v911 = vpop.f32.mrb[0].mxu0
      %912 = vdwg.mxu0
      %v913 = vpack.c.bf16 %v854, %v851
      %v914 = vpack.c.bf16 %v862, %v859
      %v915 = vpack.c.bf16 %v870, %v867
      %v916 = vpack.c.bf16 %v878, %v875
      %v917 = vpack.c.bf16 %v886, %v883
      %v918 = vpack.c.bf16 %v894, %v891
      %v919 = vpack.c.bf16 %v902, %v899
      %v920 = vpack.c.bf16 %v910, %v907
      %v921 = vld [vmem:[#allocation2] sm:$0xff]
      %v922 = vld [vmem:[#allocation2 + $0x8] sm:$0xff]
      %v923 = vld [vmem:[#allocation2 + $0x10] sm:$0xff]
      %v924 = vld [vmem:[#allocation2 + $0x18] sm:$0xff]
      %v925 = vld [vmem:[#allocation2 + $0x20] sm:$0xff]
      %v926 = vld [vmem:[#allocation2 + $0x28] sm:$0xff]
      %v927 = vld [vmem:[#allocation2 + $0x30] sm:$0xff]
      %v928 = vld [vmem:[#allocation2 + $0x38] sm:$0xff]
      %v929 = vld [vmem:[#allocation2 + $0x40] sm:$0xff]
      %v930 = vld [vmem:[#allocation2 + $0x48] sm:$0xff]
      %v931 = vld [vmem:[#allocation2 + $0x50] sm:$0xff]
      %v932 = vld [vmem:[#allocation2 + $0x58] sm:$0xff]
      %v933 = vld [vmem:[#allocation2 + $0x60] sm:$0xff]
      %v934 = vld [vmem:[#allocation2 + $0x68] sm:$0xff]
      %v935 = vld [vmem:[#allocation2 + $0x70] sm:$0xff]
      %v936 = vld [vmem:[#allocation2 + $0x78] sm:$0xff]
      %v937 = vld [vmem:[%s390] sm:$0xf]
      %v938 = vld [vmem:[%s390 + $0x4] sm:$0xf]
      %v939 = vld [vmem:[%s390 + $0x8] sm:$0xf]
      %v940 = vld [vmem:[%s390 + $0xc] sm:$0xf]
      %v941 = vld [vmem:[%s390 + $0x10] sm:$0xf]
      %v942 = vld [vmem:[%s390 + $0x14] sm:$0xf]
      %v943 = vld [vmem:[%s390 + $0x18] sm:$0xf]
      %v944 = vld [vmem:[%s390 + $0x1c] sm:$0xf]
      %v945 = vld [vmem:[%s390 + $0x20] sm:$0xf]
      %v946 = vld [vmem:[%s390 + $0x24] sm:$0xf]
      %v947 = vld [vmem:[%s390 + $0x28] sm:$0xf]
      %v948 = vld [vmem:[%s390 + $0x2c] sm:$0xf]
      %v949 = vld [vmem:[%s390 + $0x30] sm:$0xf]
      %v950 = vld [vmem:[%s390 + $0x34] sm:$0xf]
      %v951 = vld [vmem:[%s390 + $0x38] sm:$0xf]
      %v952 = vld [vmem:[%s390 + $0x3c] sm:$0xf]
      %v969 = vunpack.c.l.b16 %v937
      %v970 = vunpack.c.l.b16 %v938
      %v971 = vunpack.c.l.b16 %v939
      %v972 = vunpack.c.l.b16 %v940
      %v973 = vunpack.c.l.b16 %v941
      %v974 = vunpack.c.l.b16 %v942
      %v975 = vunpack.c.l.b16 %v943
      %v976 = vunpack.c.l.b16 %v944
      %v977 = vunpack.c.l.b16 %v945
      %v978 = vunpack.c.l.b16 %v946
      %v979 = vunpack.c.l.b16 %v947
      %v980 = vunpack.c.l.b16 %v948
      %v981 = vunpack.c.l.b16 %v949
      %v982 = vunpack.c.l.b16 %v950
      %v983 = vunpack.c.l.b16 %v951
      %v984 = vunpack.c.l.b16 %v952
      %v985 = vpack.c.b16 %v970, %v969
      %v986 = vpack.c.b16 %v972, %v971
      %v987 = vpack.c.b16 %v974, %v973
      %v988 = vpack.c.b16 %v976, %v975
      %v989 = vpack.c.b16 %v978, %v977
      %v990 = vpack.c.b16 %v980, %v979
      %v991 = vpack.c.b16 %v982, %v981
      %v992 = vpack.c.b16 %v984, %v983
      %1001 = vmatprep.subr.bf16.mxu0 0
      %1002 = vmatpush1.bf16.msra.mxu0 %v913
      %1003 = vmatprep.subr.bf16.mxu0 0
      %1004 = vmatpush1.bf16.msra.mxu0 %v914
      %1005 = vmatprep.subr.bf16.mxu0 0
      %1006 = vmatpush1.bf16.msra.mxu0 %v915
      %1007 = vmatprep.subr.bf16.mxu0 0
      %1008 = vmatpush1.bf16.msra.mxu0 %v916
      %1009 = vmatprep.subr.bf16.mxu0 0
      %1010 = vmatpush1.bf16.msra.mxu0 %v917
      %1011 = vmatprep.subr.bf16.mxu0 0
      %1012 = vmatpush1.bf16.msra.mxu0 %v918
      %1013 = vmatprep.subr.bf16.mxu0 0
      %1014 = vmatpush1.bf16.msra.mxu0 %v919
      %1015 = vmatprep.subr.bf16.mxu0 0
      %1016 = vmatpush1.bf16.msra.mxu0 %v920
      %1017 = vmatprep.subr.bf16.mxu0 0
      %1018 = vmatpush1.bf16.msra.mxu0 0
      %1019 = vmatprep.subr.bf16.mxu0 0
      %1020 = vmatpush1.bf16.msra.mxu0 0
      %1021 = vmatprep.subr.bf16.mxu0 0
      %1022 = vmatpush1.bf16.msra.mxu0 0
      %1023 = vmatprep.subr.bf16.mxu0 0
      %1024 = vmatpush1.bf16.msra.mxu0 0
      %1025 = vmatprep.subr.bf16.mxu0 0
      %1026 = vmatpush1.bf16.msra.mxu0 0
      %1027 = vmatprep.subr.bf16.mxu0 0
      %1028 = vmatpush1.bf16.msra.mxu0 0
      %1029 = vmatprep.subr.bf16.mxu0 0
      %1030 = vmatpush1.bf16.msra.mxu0 0
      %1031 = vmatprep.subr.bf16.mxu0 0
      %1032 = vmatpush1.bf16.msra.mxu0 0
      %1033 = vmatprep.mubr.bf16.mxu0 0
      %1034 = vmatmul.mubr.bf16.gmra.mrb[0].mxu0 %v985
      %v1035 = vpop.f32.mrb[0].mxu0
      %v1036 = vadd.f32 0.0, %v1035
      %v1037 = vpop.f32.mrb[0].mxu0
      %v1038 = vpop.f32.mrb[0].mxu0
      %v1039 = vadd.f32 0.0, %v1038
      %v1040 = vpop.f32.mrb[0].mxu0
      %1041 = vmatprep.mubr.bf16.mxu0 0
      %1042 = vmatmul.mubr.bf16.gmra.mrb[0].mxu0 %v986
      %v1043 = vpop.f32.mrb[0].mxu0
      %v1044 = vadd.f32 0.0, %v1043
      %v1045 = vpop.f32.mrb[0].mxu0
      %v1046 = vpop.f32.mrb[0].mxu0
      %v1047 = vadd.f32 0.0, %v1046
      %v1048 = vpop.f32.mrb[0].mxu0
      %1049 = vmatprep.mubr.bf16.mxu0 0
      %1050 = vmatmul.mubr.bf16.gmra.mrb[0].mxu0 %v987
      %v1051 = vpop.f32.mrb[0].mxu0
      %v1052 = vadd.f32 0.0, %v1051
      %v1053 = vpop.f32.mrb[0].mxu0
      %v1054 = vpop.f32.mrb[0].mxu0
      %v1055 = vadd.f32 0.0, %v1054
      %v1056 = vpop.f32.mrb[0].mxu0
      %1057 = vmatprep.mubr.bf16.mxu0 0
      %1058 = vmatmul.mubr.bf16.gmra.mrb[0].mxu0 %v988
      %v1059 = vpop.f32.mrb[0].mxu0
      %v1060 = vadd.f32 0.0, %v1059
      %v1061 = vpop.f32.mrb[0].mxu0
      %v1062 = vpop.f32.mrb[0].mxu0
      %v1063 = vadd.f32 0.0, %v1062
      %v1064 = vpop.f32.mrb[0].mxu0
      %1065 = vmatprep.mubr.bf16.mxu0 0
      %1066 = vmatmul.mubr.bf16.gmra.mrb[0].mxu0 %v989
      %v1067 = vpop.f32.mrb[0].mxu0
      %v1068 = vadd.f32 0.0, %v1067
      %v1069 = vpop.f32.mrb[0].mxu0
      %v1070 = vpop.f32.mrb[0].mxu0
      %v1071 = vadd.f32 0.0, %v1070
      %v1072 = vpop.f32.mrb[0].mxu0
      %1073 = vmatprep.mubr.bf16.mxu0 0
      %1074 = vmatmul.mubr.bf16.gmra.mrb[0].mxu0 %v990
      %v1075 = vpop.f32.mrb[0].mxu0
      %v1076 = vadd.f32 0.0, %v1075
      %v1077 = vpop.f32.mrb[0].mxu0
      %v1078 = vpop.f32.mrb[0].mxu0
      %v1079 = vadd.f32 0.0, %v1078
      %v1080 = vpop.f32.mrb[0].mxu0
      %1081 = vmatprep.mubr.bf16.mxu0 0
      %1082 = vmatmul.mubr.bf16.gmra.mrb[0].mxu0 %v991
      %v1083 = vpop.f32.mrb[0].mxu0
      %v1084 = vadd.f32 0.0, %v1083
      %v1085 = vpop.f32.mrb[0].mxu0
      %v1086 = vpop.f32.mrb[0].mxu0
      %v1087 = vadd.f32 0.0, %v1086
      %v1088 = vpop.f32.mrb[0].mxu0
      %1089 = vmatprep.mubr.bf16.mxu0 0
      %1090 = vmatmul.mubr.bf16.gmra.mrb[0].mxu0 %v992
      %v1091 = vpop.f32.mrb[0].mxu0
      %v1092 = vadd.f32 0.0, %v1091
      %v1093 = vpop.f32.mrb[0].mxu0
      %v1094 = vpop.f32.mrb[0].mxu0
      %v1095 = vadd.f32 0.0, %v1094
      %v1096 = vpop.f32.mrb[0].mxu0
      %1097 = vdwg.mxu0
      %v1098 = vadd.f32 %v921, %v1036
      %v1099 = vadd.f32 %v922, %v1039
      %v1100 = vadd.f32 %v923, %v1044
      %v1101 = vadd.f32 %v924, %v1047
      %v1102 = vadd.f32 %v925, %v1052
      %v1103 = vadd.f32 %v926, %v1055
      %v1104 = vadd.f32 %v927, %v1060
      %v1105 = vadd.f32 %v928, %v1063
      %v1106 = vadd.f32 %v929, %v1068
      %v1107 = vadd.f32 %v930, %v1071
      %v1108 = vadd.f32 %v931, %v1076
      %v1109 = vadd.f32 %v932, %v1079
      %v1110 = vadd.f32 %v933, %v1084
      %v1111 = vadd.f32 %v934, %v1087
      %v1112 = vadd.f32 %v935, %v1092
      %v1113 = vadd.f32 %v936, %v1095
      %1114 = vst [vmem:[#allocation2] sm:$0xff] %v1098
      %1115 = vst [vmem:[#allocation2 + $0x8] sm:$0xff] %v1099
      %1116 = vst [vmem:[#allocation2 + $0x10] sm:$0xff] %v1100
      %1117 = vst [vmem:[#allocation2 + $0x18] sm:$0xff] %v1101
      %1118 = vst [vmem:[#allocation2 + $0x20] sm:$0xff] %v1102
      %1119 = vst [vmem:[#allocation2 + $0x28] sm:$0xff] %v1103
      %1120 = vst [vmem:[#allocation2 + $0x30] sm:$0xff] %v1104
      %1121 = vst [vmem:[#allocation2 + $0x38] sm:$0xff] %v1105
      %1122 = vst [vmem:[#allocation2 + $0x40] sm:$0xff] %v1106
      %1123 = vst [vmem:[#allocation2 + $0x48] sm:$0xff] %v1107
      %1124 = vst [vmem:[#allocation2 + $0x50] sm:$0xff] %v1108
      %1125 = vst [vmem:[#allocation2 + $0x58] sm:$0xff] %v1109
      %1126 = vst [vmem:[#allocation2 + $0x60] sm:$0xff] %v1110
      %1127 = vst [vmem:[#allocation2 + $0x68] sm:$0xff] %v1111
      %1128 = vst [vmem:[#allocation2 + $0x70] sm:$0xff] %v1112
      %1129 = vst [vmem:[#allocation2 + $0x78] sm:$0xff] %v1113
      // Predicated region
      $region49: #{hetero_gnn_forward.3} parent=43 // pred_check
        %p1130 = pneg %p436
      $region50: #{hetero_gnn_forward.3} parent=43 // pred_check_branch
        %1132 = sbr.rel (%p1130) target = $region52
      $region51: #{hetero_gnn_forward.3} parent=43 // pred_region
        %v1133 = vld [vmem:[#allocation2] sm:$0xff]
        %v1134 = vld [vmem:[#allocation2 + $0x8] sm:$0xff]
        %v1135 = vld [vmem:[#allocation2 + $0x10] sm:$0xff]
        %v1136 = vld [vmem:[#allocation2 + $0x18] sm:$0xff]
        %v1137 = vld [vmem:[#allocation2 + $0x20] sm:$0xff]
        %v1138 = vld [vmem:[#allocation2 + $0x28] sm:$0xff]
        %v1139 = vld [vmem:[#allocation2 + $0x30] sm:$0xff]
        %v1140 = vld [vmem:[#allocation2 + $0x38] sm:$0xff]
        %v1141 = vld [vmem:[#allocation2 + $0x40] sm:$0xff]
        %v1142 = vld [vmem:[#allocation2 + $0x48] sm:$0xff]
        %v1143 = vld [vmem:[#allocation2 + $0x50] sm:$0xff]
        %v1144 = vld [vmem:[#allocation2 + $0x58] sm:$0xff]
        %v1145 = vld [vmem:[#allocation2 + $0x60] sm:$0xff]
        %v1146 = vld [vmem:[#allocation2 + $0x68] sm:$0xff]
        %v1147 = vld [vmem:[#allocation2 + $0x70] sm:$0xff]
        %v1148 = vld [vmem:[#allocation2 + $0x78] sm:$0xff]
        %v1149 = vmax.f32 %v1133, 0.0
        %v1150 = vmax.f32 %v1134, 0.0
        %v1151 = vmax.f32 %v1135, 0.0
        %v1152 = vmax.f32 %v1136, 0.0
        %v1153 = vmax.f32 %v1137, 0.0
        %v1154 = vmax.f32 %v1138, 0.0
        %v1155 = vmax.f32 %v1139, 0.0
        %v1156 = vmax.f32 %v1140, 0.0
        %v1157 = vmax.f32 %v1141, 0.0
        %v1158 = vmax.f32 %v1142, 0.0
        %v1159 = vmax.f32 %v1143, 0.0
        %v1160 = vmax.f32 %v1144, 0.0
        %v1161 = vmax.f32 %v1145, 0.0
        %v1162 = vmax.f32 %v1146, 0.0
        %v1163 = vmax.f32 %v1147, 0.0
        %v1164 = vmax.f32 %v1148, 0.0
        %v1165 = vpack.c.bf16 %v1150, %v1149
        %v1166 = vpack.c.bf16 %v1152, %v1151
        %v1167 = vpack.c.bf16 %v1154, %v1153
        %v1168 = vpack.c.bf16 %v1156, %v1155
        %v1169 = vpack.c.bf16 %v1158, %v1157
        %v1170 = vpack.c.bf16 %v1160, %v1159
        %v1171 = vpack.c.bf16 %v1162, %v1161
        %v1172 = vpack.c.bf16 %v1164, %v1163
        %v1181 = vunpack.c.l.b16 %v1165
        %v1182 = vunpack.c.h.b16 %v1165
        %v1183 = vunpack.c.l.b16 %v1166
        %v1184 = vunpack.c.h.b16 %v1166
        %v1185 = vunpack.c.l.b16 %v1167
        %v1186 = vunpack.c.h.b16 %v1167
        %v1187 = vunpack.c.l.b16 %v1168
        %v1188 = vunpack.c.h.b16 %v1168
        %v1189 = vunpack.c.l.b16 %v1169
        %v1190 = vunpack.c.h.b16 %v1169
        %v1191 = vunpack.c.l.b16 %v1170
        %v1192 = vunpack.c.h.b16 %v1170
        %v1193 = vunpack.c.l.b16 %v1171
        %v1194 = vunpack.c.h.b16 %v1171
        %v1195 = vunpack.c.l.b16 %v1172
        %v1196 = vunpack.c.h.b16 %v1172
        %v1197 = vpack.c.b16 %v1181, %v1181
        %v1198 = vpack.c.b16 %v1182, %v1182
        %v1199 = vpack.c.b16 %v1183, %v1183
        %v1200 = vpack.c.b16 %v1184, %v1184
        %v1201 = vpack.c.b16 %v1185, %v1185
        %v1202 = vpack.c.b16 %v1186, %v1186
        %v1203 = vpack.c.b16 %v1187, %v1187
        %v1204 = vpack.c.b16 %v1188, %v1188
        %v1205 = vpack.c.b16 %v1189, %v1189
        %v1206 = vpack.c.b16 %v1190, %v1190
        %v1207 = vpack.c.b16 %v1191, %v1191
        %v1208 = vpack.c.b16 %v1192, %v1192
        %v1209 = vpack.c.b16 %v1193, %v1193
        %v1210 = vpack.c.b16 %v1194, %v1194
        %v1211 = vpack.c.b16 %v1195, %v1195
        %v1212 = vpack.c.b16 %v1196, %v1196
        %1229 = vst [vmem:[%s433] sm:$0xf] %v1197
        %1230 = vst [vmem:[%s433 + $0x4] sm:$0xf] %v1198
        %1231 = vst [vmem:[%s433 + $0x8] sm:$0xf] %v1199
        %1232 = vst [vmem:[%s433 + $0xc] sm:$0xf] %v1200
        %1233 = vst [vmem:[%s433 + $0x10] sm:$0xf] %v1201
        %1234 = vst [vmem:[%s433 + $0x14] sm:$0xf] %v1202
        %1235 = vst [vmem:[%s433 + $0x18] sm:$0xf] %v1203
        %1236 = vst [vmem:[%s433 + $0x1c] sm:$0xf] %v1204
        %1237 = vst [vmem:[%s433 + $0x20] sm:$0xf] %v1205
        %1238 = vst [vmem:[%s433 + $0x24] sm:$0xf] %v1206
        %1239 = vst [vmem:[%s433 + $0x28] sm:$0xf] %v1207
        %1240 = vst [vmem:[%s433 + $0x2c] sm:$0xf] %v1208
        %1241 = vst [vmem:[%s433 + $0x30] sm:$0xf] %v1209
        %1242 = vst [vmem:[%s433 + $0x34] sm:$0xf] %v1210
        %1243 = vst [vmem:[%s433 + $0x38] sm:$0xf] %v1211
        %1244 = vst [vmem:[%s433 + $0x3c] sm:$0xf] %v1212
      $region52: #{hetero_gnn_forward.3} parent=43 // pred_fallthru
        _
      %s1245 = smul.u32 16, %s23
      %p1246 = scmp.lt.s32.totalorder %s22, 1
      %s1247 = scalar_select %p1246, %s22, 1
      %p1248 = scmp.lt.s32.totalorder %s1245, 15
      %s1249 = scalar_select %p1248, %s1245, 15
      %s1250 = smul.addr %s1247, 16
      %s1251 = sadd.s32 %s1249, %s1250
      %s1252 = smul.addr %s1251, 4
      %s1253 = scalar_lea.vmem %s6, %s1252
      // Predicated region
      $region53: #{hetero_gnn_forward.3} parent=43 // pred_check
        %p1254 = pneg %p220
      $region54: #{hetero_gnn_forward.3} parent=43 // pred_check_branch
        %1256 = sbr.rel (%p1254) target = $region56
      $region55: #{hetero_gnn_forward.3} parent=43 // pred_region
        %s1257 = smul.u32 16, %s23
      $region56: #{hetero_gnn_forward.3} parent=43 // pred_fallthru
        _
    $region44: #{hetero_gnn_forward.3} parent=5 // pred_fallthru
      _
    %p1258 = scmp.le.s32.totalorder 2, %s12
    // Predicated region
    $region57: #{hetero_gnn_forward.3} parent=5 // pred_check
      %p1259 = pneg %p1258
    $region58: #{hetero_gnn_forward.3} parent=5 // pred_check_branch
      %1261 = sbr.rel (%p1259) target = $region60
    $region59: #{hetero_gnn_forward.3} parent=5 // pred_region
      %s1262 = ssub.s32 %s12, 2
      // Predicated region
      $region61: #{hetero_gnn_forward.3} parent=59 // pred_check
        %p1263 = pneg %p226
      $region62: #{hetero_gnn_forward.3} parent=59 // pred_check_branch
        %1265 = sbr.rel (%p1263) target = $region64
      $region63: #{hetero_gnn_forward.3} parent=59 // pred_region
        %s1266 = smul.u32 16, %s26
        %p1267 = scmp.lt.s32.totalorder %s25, 1
        %s1268 = scalar_select %p1267, %s25, 1
        %p1269 = scmp.lt.s32.totalorder %s1266, 15
        %s1270 = scalar_select %p1269, %s1266, 15
        %s1271 = smul.addr %s1268, 16
        %s1272 = sadd.s32 %s1270, %s1271
        %s1273 = smul.addr %s1272, 4
        %s1274 = scalar_lea.vmem %s6, %s1273
      $region64: #{hetero_gnn_forward.3} parent=59 // pred_fallthru
        _
    $region60: #{hetero_gnn_forward.3} parent=5 // pred_fallthru
      _
  $region6: #{hetero_gnn_forward.3} parent=0 // loop_footer
    %s16 = sadd.s32 1, %s12
  $region7: #{hetero_gnn_forward.3} parent=0 // loop_footer_branch
    %11 = sbr.rel target = $region3
  $region8: #{hetero_gnn_forward.3} parent=0 // loop_exit
    _

</llo_original>
